<compile_context>
chip_gen: v7x
topology: tpu7x:2x2x1
jax: 0.10.0
libtpu: 0.0.40
codegen_flags: <defaults>
</compile_context>

<pallas_src>
import functools
import math

import jax
import jax.numpy as jnp
from jax import lax
from jax.experimental import pallas as pl
from jax.experimental.pallas import tpu as pltpu

TAU = 0.5
EPS = 1e-12                      # F.normalize default eps
_DN = (((1,), (1,)), ((), ()))   # contract dim 1 with dim 1 (A @ B.T, no transpose op)


# -----------------------------------------------------------------------------
# Kernel 1: fused projection + L2-normalize (+ fold 1/sqrt(tau)) on flat rows.
#   Rows are the two views stacked along the node axis, so one matmul chain
#   handles both views (merged per-view projections).
# -----------------------------------------------------------------------------
def _proj_norm_kernel(z_ref, w1t_ref, b1_ref, w2t_ref, b2_ref, h_ref):
    # bf16 x bf16 MXU matmuls, f32 accumulation / ELU / normalize.
    h = jnp.dot(z_ref[...], w1t_ref[...],
                preferred_element_type=jnp.float32) + b1_ref[...]
    # ELU(alpha=1); clamp before exp so large positives never hit exp -> inf.
    h = jnp.where(h > 0, h, jnp.exp(jnp.minimum(h, 0.0)) - 1.0)
    out = jnp.dot(h.astype(w2t_ref.dtype), w2t_ref[...],
                  preferred_element_type=jnp.float32) + b2_ref[...]
    # F.normalize(dim=1) with 1/sqrt(tau) folded in:
    #   out * rsqrt(tau * max(|out|^2, eps^2))
    ss = jnp.sum(out * out, axis=1, keepdims=True)
    inv = lax.rsqrt(TAU * jnp.maximum(ss, EPS * EPS))
    h_ref[...] = (out * inv).astype(h_ref.dtype)


# -----------------------------------------------------------------------------
# Kernel 2: flash-style tiled loss over the (2N) x (2N) similarity space.
#   grid = (anchor/column tile i, reduction tile j), j last + "arbitrary".
#   acc[b] = sum_a  1[id_a == id_b] * exp(hall_a . hall_b)      (sim/tau folded)
#   out[b] = 0.5 * ( log(acc[b] - exp(|hall_b|^2)) - hall_b . hall_partner(b) )
#   Summing the two columns of a node pair gives its full per-node loss.
# -----------------------------------------------------------------------------
def _gca_loss_kernel(hc_ref, hp_ref, hr_ref, bc_ref, br_ref, out_ref, acc_ref,
                     *, exp_dtype):
    # hc_ref: (TI, D) anchor/column rows of hall (bf16, 1/sqrt(tau) folded)
    # hp_ref: (TI, D) the other view of the same nodes (numerator diagonal)
    # hr_ref: (TJ, D) reduction rows of hall
    # bc_ref: (1, TI) int32 anchor graph ids (lane layout)
    # br_ref: (TJ, 1) int32 reduction-row graph ids (sublane layout)
    j = pl.program_id(1)

    @pl.when(j == 0)
    def _init():
        acc_ref[...] = jnp.zeros_like(acc_ref)

    # tile[a, b] = hall_row_a . hall_col_b == sim / tau (rsqrt(tau) folded twice)
    s = lax.dot_general(hr_ref[...], hc_ref[...], _DN,
                        preferred_element_type=jnp.float32)       # (TJ, TI) f32
    mask = br_ref[...] == bc_ref[...]                             # (TJ, TI)
    e = jnp.exp(s.astype(exp_dtype))                              # bf16 EUP on v6e/v7x
    e = jnp.where(mask, e, jnp.zeros((), e.dtype))
    acc_ref[...] += jnp.sum(e.astype(jnp.float32), axis=0, keepdims=True)

    @pl.when(j == pl.num_programs(1) - 1)
    def _finalize():
        hc = hc_ref[...].astype(jnp.float32)
        hp = hp_ref[...].astype(jnp.float32)
        ones_d = jnp.ones((1, hc.shape[1]), jnp.float32)
        # Lane-dense (1, TI) row sums via skinny ones-matmuls (no transposes).
        # The self term uses the same rounded operands the accumulator saw, so
        # the subtraction cancels exactly (no mismatched analytic constant).
        d_self = lax.dot_general(ones_d, hc * hc, _DN,
                                 preferred_element_type=jnp.float32)
        d_num = lax.dot_general(ones_d, hc * hp, _DN,
                                preferred_element_type=jnp.float32)
        den = acc_ref[...] - jnp.exp(d_self)
        half = 0.5 * (jnp.log(den) - d_num)
        valid = bc_ref[...] >= 0                                  # gate pad columns
        out_ref[...] = jnp.where(valid, half, 0.0).astype(out_ref.dtype)


# -----------------------------------------------------------------------------
# Wrappers
# -----------------------------------------------------------------------------
def _round_up(x, m):
    return (x + m - 1) // m * m


def _pick_tile_i(n_pad):
    # Must divide n_pad so the "partner view" block offset is integral; the flat
    # 2*n_pad row space then always has >= 2 parallel i-tiles (v7x megacore).
    for t in (512, 256, 128):
        if n_pad % t == 0:
            return t
    return 128


def _default_exp_dtype():
    # bf16 EUP/VPU exists on v6e/v7x (~2x transcendental throughput); keep the
    # elementwise stream in f32 on v5e and anything unrecognized.
    try:
        kind = jax.devices()[0].device_kind.lower()
    except Exception:
        return jnp.float32
    return jnp.bfloat16 if ("v6" in kind or "v7" in kind) else jnp.float32


def gca_per_node_loss(z1, z2, batch_ids, params, *, matmul_dtype=jnp.bfloat16,
                      tile_i=None, tile_j=None, exp_dtype=None):
    """Per-node 0.5*(semi_loss(h1,h2)+semi_loss(h2,h1)) (GCA.loss before mean/sum)."""
    n, d = z1.shape
    n_pad = _round_up(n, 128)
    m = 2 * n_pad                               # both views stacked on the node axis

    if tile_i is None:
        tile_i = _pick_tile_i(n_pad)
    if tile_j is None:
        tile_j = 256                            # m is always a multiple of 256
    if exp_dtype is None:
        exp_dtype = _default_exp_dtype()

    w1, b1, w2, b2 = params
    # pre-transpose PyTorch (out, in) weights once; bf16 weights for MXU rate.
    w1t = jnp.asarray(w1, jnp.float32).T.astype(matmul_dtype)
    w2t = jnp.asarray(w2, jnp.float32).T.astype(matmul_dtype)
    b1r = jnp.asarray(b1, jnp.float32).reshape(1, d)
    b2r = jnp.asarray(b2, jnp.float32).reshape(1, d)

    # Flat (2*Npad, D) inputs; pad rows get graph id -1 so they never match a
    # real graph (real ids are assumed >= 0) and contribute nothing.
    pad = n_pad - n
    z_all = jnp.concatenate(
        [jnp.pad(jnp.asarray(z1, jnp.float32), ((0, pad), (0, 0))),
         jnp.pad(jnp.asarray(z2, jnp.float32), ((0, pad), (0, 0)))],
        axis=0).astype(matmul_dtype)                               # (m, d)
    ids = jnp.pad(jnp.asarray(batch_ids, jnp.int32), (0, pad), constant_values=-1)
    ids_all = jnp.concatenate([ids, ids])                          # (m,)
    ids_lane = ids_all.reshape(1, m)
    ids_sub = ids_all.reshape(m, 1)

    vmem_limit = 32 * 1024 * 1024

    # ---- kernel 1: fc1 -> ELU -> fc2 -> normalize * 1/sqrt(tau) (both views) ----
    n_row_blocks = m // tile_i
    h_all = pl.pallas_call(
        _proj_norm_kernel,
        out_shape=jax.ShapeDtypeStruct((m, d), matmul_dtype),
        grid=(n_row_blocks,),
        in_specs=[
            pl.BlockSpec((tile_i, d), lambda i: (i, 0)),
            pl.BlockSpec((d, d), lambda i: (0, 0)),
            pl.BlockSpec((1, d), lambda i: (0, 0)),
            pl.BlockSpec((d, d), lambda i: (0, 0)),
            pl.BlockSpec((1, d), lambda i: (0, 0)),
        ],
        out_specs=pl.BlockSpec((tile_i, d), lambda i: (i, 0)),
        compiler_params=pltpu.CompilerParams(
            dimension_semantics=("parallel",),
            vmem_limit_bytes=vmem_limit),
        cost_estimate=pl.CostEstimate(
            flops=4 * m * d * d,
            transcendentals=m * d + m,
            bytes_accessed=4 * m * d + 4 * d * d),
    )(z_all, w1t, b1r, w2t, b2r)

    # ---- kernel 2: tiled masked-exp column sums + per-column half losses ----
    ni = m // tile_i
    nj = m // tile_j
    nhalf = n_pad // tile_i       # block offset of "the other view of the same nodes"

    kernel2 = functools.partial(_gca_loss_kernel, exp_dtype=exp_dtype)
    per_col = pl.pallas_call(
        kernel2,
        out_shape=jax.ShapeDtypeStruct((1, m), jnp.float32),
        grid=(ni, nj),                         # (anchor/column tiles, reduction tiles)
        in_specs=[
            pl.BlockSpec((tile_i, d), lambda i, j: (i, 0)),                    # hc
            pl.BlockSpec((tile_i, d),
                         lambda i, j: (jnp.where(i < nhalf, i + nhalf, i - nhalf), 0)),  # hp
            pl.BlockSpec((tile_j, d), lambda i, j: (j, 0)),                    # hr
            pl.BlockSpec((1, tile_i), lambda i, j: (0, i)),                    # bc
            pl.BlockSpec((tile_j, 1), lambda i, j: (j, 0)),                    # br
        ],
        out_specs=pl.BlockSpec((1, tile_i), lambda i, j: (0, i)),              # lane dense
        scratch_shapes=[pltpu.VMEM((1, tile_i), jnp.float32)],
        compiler_params=pltpu.CompilerParams(
            dimension_semantics=("parallel", "arbitrary"),
            vmem_limit_bytes=vmem_limit),
        cost_estimate=pl.CostEstimate(
            flops=2 * m * m * d + 6 * m * d,
            transcendentals=m * m + 2 * m,
            bytes_accessed=(ni + 2) * m * d * 2 + 12 * m),
    )(h_all, h_all, h_all, ids_lane, ids_sub)

    per_col = per_col[0]                      # (m,)
    # column b < n_pad: 0.5*log(den1_b) - 0.5*sim12_b ; column b+n_pad: dir-2 half
    return per_col[:n] + per_col[n_pad:n_pad + n]


def gca_loss(z1, z2, batch_ids, params, mean=True, *, matmul_dtype=jnp.bfloat16,
             tile_i=None, tile_j=None, exp_dtype=None):
    ret = gca_per_node_loss(z1, z2, batch_ids, params, matmul_dtype=matmul_dtype,
                            tile_i=tile_i, tile_j=tile_j, exp_dtype=exp_dtype)
    return jnp.mean(ret) if mean else jnp.sum(ret)


# -----------------------------------------------------------------------------
# Pure-JAX reference (mirrors the PyTorch code) for the correctness check.
# -----------------------------------------------------------------------------
def _ref_loss(z1, z2, batch_ids, params, mean=True):
    w1, b1, w2, b2 = params

    def proj(z):
        h = z @ w1.T + b1
        h = jnp.where(h > 0, h, jnp.exp(h) - 1.0)
        return h @ w2.T + b2

    def norm(z):
        return z / jnp.maximum(jnp.linalg.norm(z, axis=1, keepdims=True), EPS)

    m = (batch_ids[None, :] == batch_ids[:, None]).astype(jnp.float32)

    def semi(a, b):
        an, bn = norm(a), norm(b)
        refl = jnp.exp((an @ an.T) / TAU) * m
        betw = jnp.exp((an @ bn.T) / TAU) * m
        return -jnp.log(jnp.diag(betw) /
                        (refl.sum(1) + betw.sum(1) - jnp.diag(refl)))

    h1, h2 = proj(z1), proj(z2)
    ret = 0.5 * (semi(h1, h2) + semi(h2, h1))
    return jnp.mean(ret) if mean else jnp.sum(ret)


if __name__ == "__main__":
    N, D = 8, 32                       # 8 nodes, emb_dim = 32
    key = jax.random.PRNGKey(0)
    k1, k2, kw1, kb1, kw2, kb2 = jax.random.split(key, 6)

    z1 = jax.random.normal(k1, (N, D), dtype=jnp.float32)
    z2 = jax.random.normal(k2, (N, D), dtype=jnp.float32)
    batch_ids = jnp.array([0, 0, 0, 1, 1, 2, 2, 2], dtype=jnp.int32)

    w1 = 0.1 * jax.random.normal(kw1, (D, D), dtype=jnp.float32)
    b1 = 0.1 * jax.random.normal(kb1, (D,), dtype=jnp.float32)
    w2 = 0.1 * jax.random.normal(kw2, (D, D), dtype=jnp.float32)
    b2 = 0.1 * jax.random.normal(kb2, (D,), dtype=jnp.float32)
    params = (w1, b1, w2, b2)

    loss_fn = jax.jit(lambda a, b, ids: gca_loss(a, b, ids, params, mean=True))
    loss = jax.block_until_ready(loss_fn(z1, z2, batch_ids))

    ref = _ref_loss(z1, z2, batch_ids, params, mean=True)
    # bf16 MXU operands in the similarity / projection matmuls -> few-% tolerance.
    assert bool(jnp.isfinite(loss)), loss
    assert jnp.allclose(loss, ref, rtol=5e-2, atol=5e-2), (loss, ref)

    print("KERNEL_OK")
</pallas_src>

<mosaic_0001>
module attributes {stable_mosaic.version = 11 : i64} {
  func.func @_proj_norm_kernel(%arg0: i32, %arg1: memref<128x32xbf16, #tpu.memory_space<vmem>>, %arg2: memref<32x32xbf16, #tpu.memory_space<vmem>>, %arg3: memref<1x32xf32, #tpu.memory_space<vmem>>, %arg4: memref<32x32xbf16, #tpu.memory_space<vmem>>, %arg5: memref<1x32xf32, #tpu.memory_space<vmem>>, %arg6: memref<128x32xbf16, #tpu.memory_space<vmem>>) attributes {dimension_semantics = [#tpu.dimension_semantics<parallel>], iteration_bounds = array<i64: 2>, scalar_prefetch = 0 : i64, scratch_operands = 0 : i64, tpu.core_type = #tpu.core_type<tc>, window_params = [{transform_indices = @transform_0, window_bounds = array<i64: 128, 32>}, {pipeline_mode = #tpu.pipeline_mode<synchronous>, transform_indices = @transform_1, window_bounds = array<i64: 32, 32>}, {pipeline_mode = #tpu.pipeline_mode<synchronous>, transform_indices = @transform_2, window_bounds = array<i64: 1, 32>}, {pipeline_mode = #tpu.pipeline_mode<synchronous>, transform_indices = @transform_3, window_bounds = array<i64: 32, 32>}, {pipeline_mode = #tpu.pipeline_mode<synchronous>, transform_indices = @transform_4, window_bounds = array<i64: 1, 32>}, {transform_indices = @transform_5, window_bounds = array<i64: 128, 32>}]} {
    %c0 = arith.constant 0 : index
    %c0_0 = arith.constant 0 : index
    %0 = vector.load %arg1[%c0, %c0_0] : memref<128x32xbf16, #tpu.memory_space<vmem>>, vector<128x32xbf16>
    %c0_1 = arith.constant 0 : index
    %c0_2 = arith.constant 0 : index
    %1 = vector.load %arg2[%c0_1, %c0_2] : memref<32x32xbf16, #tpu.memory_space<vmem>>, vector<32x32xbf16>
    %cst = arith.constant dense<0.000000e+00> : vector<128x32xf32>
    %2 = tpu.matmul %0, %1, %cst {dimension_numbers = #tpu.dot_dimension_numbers<[1], [0], [0], [1], [0, 0, 1, 1], [], []>} : vector<128x32xbf16>, vector<32x32xbf16>, vector<128x32xf32> -> vector<128x32xf32>
    %c0_3 = arith.constant 0 : index
    %c0_4 = arith.constant 0 : index
    %3 = vector.load %arg3[%c0_3, %c0_4] : memref<1x32xf32, #tpu.memory_space<vmem>>, vector<1x32xf32>
    %4 = vector.broadcast %3 : vector<1x32xf32> to vector<128x32xf32>
    %5 = arith.addf %2, %4 : vector<128x32xf32>
    %cst_5 = arith.constant 0.000000e+00 : f32
    %6 = vector.broadcast %cst_5 : f32 to vector<128x32xf32>
    %7 = arith.cmpf ogt, %5, %6 : vector<128x32xf32>
    %cst_6 = arith.constant 0.000000e+00 : f32
    %8 = vector.broadcast %cst_6 : f32 to vector<128x32xf32>
    %9 = arith.minimumf %5, %8 : vector<128x32xf32>
    %10 = math.exp %9 : vector<128x32xf32>
    %cst_7 = arith.constant 1.000000e+00 : f32
    %11 = vector.broadcast %cst_7 : f32 to vector<128x32xf32>
    %12 = arith.subf %10, %11 : vector<128x32xf32>
    %13 = arith.select %7, %5, %12 : vector<128x32xi1>, vector<128x32xf32>
    %14 = arith.truncf %13 : vector<128x32xf32> to vector<128x32xbf16>
    %c0_8 = arith.constant 0 : index
    %c0_9 = arith.constant 0 : index
    %15 = vector.load %arg4[%c0_8, %c0_9] : memref<32x32xbf16, #tpu.memory_space<vmem>>, vector<32x32xbf16>
    %cst_10 = arith.constant dense<0.000000e+00> : vector<128x32xf32>
    %16 = tpu.matmul %14, %15, %cst_10 {dimension_numbers = #tpu.dot_dimension_numbers<[1], [0], [0], [1], [0, 0, 1, 1], [], []>} : vector<128x32xbf16>, vector<32x32xbf16>, vector<128x32xf32> -> vector<128x32xf32>
    %c0_11 = arith.constant 0 : index
    %c0_12 = arith.constant 0 : index
    %17 = vector.load %arg5[%c0_11, %c0_12] : memref<1x32xf32, #tpu.memory_space<vmem>>, vector<1x32xf32>
    %18 = vector.broadcast %17 : vector<1x32xf32> to vector<128x32xf32>
    %19 = arith.addf %16, %18 : vector<128x32xf32>
    %20 = arith.mulf %19, %19 : vector<128x32xf32>
    %cst_13 = arith.constant dense<0.000000e+00> : vector<128xf32>
    %21 = vector.multi_reduction <add>, %20, %cst_13 [1] : vector<128x32xf32> to vector<128xf32>
    %22 = vector.shape_cast %21 : vector<128xf32> to vector<128x1xf32>
    %cst_14 = arith.constant 1.000000e-24 : f32
    %23 = vector.broadcast %cst_14 : f32 to vector<128x1xf32>
    %24 = arith.maximumf %22, %23 : vector<128x1xf32>
    %cst_15 = arith.constant 5.000000e-01 : f32
    %25 = vector.broadcast %cst_15 : f32 to vector<128x1xf32>
    %26 = arith.mulf %25, %24 : vector<128x1xf32>
    %27 = math.rsqrt %26 : vector<128x1xf32>
    %28 = vector.broadcast %27 : vector<128x1xf32> to vector<128x32xf32>
    %29 = arith.mulf %19, %28 : vector<128x32xf32>
    %30 = arith.truncf %29 : vector<128x32xf32> to vector<128x32xbf16>
    %c0_16 = arith.constant 0 : index
    %c0_17 = arith.constant 0 : index
    %31 = vector.load %arg6[%c0_16, %c0_17] : memref<128x32xbf16, #tpu.memory_space<vmem>>, vector<128x32xbf16>
    tpu.vector_store %arg6[%c0_16, %c0_17], %30 {strides = array<i32>} : memref<128x32xbf16, #tpu.memory_space<vmem>>, vector<128x32xbf16>,
    return
  }
  func.func @transform_0(%arg0: i32) -> (i32, i32) {
    %c0_i32 = arith.constant 0 : i32
    %c0_i32_0 = arith.constant 0 : i32
    return %arg0, %c0_i32 : i32, i32
  }
  func.func @transform_1(%arg0: i32) -> (i32, i32) {
    %c0_i32 = arith.constant 0 : i32
    %c0_i32_0 = arith.constant 0 : i32
    %c0_i32_1 = arith.constant 0 : i32
    return %c0_i32, %c0_i32_0 : i32, i32
  }
  func.func @transform_2(%arg0: i32) -> (i32, i32) {
    %c0_i32 = arith.constant 0 : i32
    %c0_i32_0 = arith.constant 0 : i32
    %c0_i32_1 = arith.constant 0 : i32
    return %c0_i32, %c0_i32_0 : i32, i32
  }
  func.func @transform_3(%arg0: i32) -> (i32, i32) {
    %c0_i32 = arith.constant 0 : i32
    %c0_i32_0 = arith.constant 0 : i32
    %c0_i32_1 = arith.constant 0 : i32
    return %c0_i32, %c0_i32_0 : i32, i32
  }
  func.func @transform_4(%arg0: i32) -> (i32, i32) {
    %c0_i32 = arith.constant 0 : i32
    %c0_i32_0 = arith.constant 0 : i32
    %c0_i32_1 = arith.constant 0 : i32
    return %c0_i32, %c0_i32_0 : i32, i32
  }
  func.func @transform_5(%arg0: i32) -> (i32, i32) {
    %c0_i32 = arith.constant 0 : i32
    %c0_i32_0 = arith.constant 0 : i32
    return %arg0, %c0_i32 : i32, i32
  }
}

module attributes {stable_mosaic.version = 11 : i64} {
  func.func @_gca_loss_kernel(%arg0: i32, %arg1: i32, %arg2: memref<128x32xbf16, #tpu.memory_space<vmem>>, %arg3: memref<128x32xbf16, #tpu.memory_space<vmem>>, %arg4: memref<256x32xbf16, #tpu.memory_space<vmem>>, %arg5: memref<1x128xi32, #tpu.memory_space<vmem>>, %arg6: memref<256x1xi32, #tpu.memory_space<vmem>>, %arg7: memref<1x128xf32, #tpu.memory_space<vmem>>, %arg8: memref<1x128xf32, #tpu.memory_space<vmem>>) attributes {dimension_semantics = [#tpu.dimension_semantics<parallel>, #tpu.dimension_semantics<arbitrary>], iteration_bounds = array<i64: 2, 1>, scalar_prefetch = 0 : i64, scratch_operands = 1 : i64, tpu.core_type = #tpu.core_type<tc>, window_params = [{transform_indices = @transform_0, window_bounds = array<i64: 128, 32>}, {transform_indices = @transform_1, window_bounds = array<i64: 128, 32>}, {transform_indices = @transform_2, window_bounds = array<i64: 256, 32>}, {transform_indices = @transform_3, window_bounds = array<i64: 1, 128>}, {transform_indices = @transform_4, window_bounds = array<i64: 256, 1>}, {transform_indices = @transform_5, window_bounds = array<i64: 1, 128>}]} {
    %c0_i32 = arith.constant 0 : i32
    %0 = arith.cmpi eq, %arg1, %c0_i32 : i32
    %1 = arith.extui %0 : i1 to i32
    %c0_i32_0 = arith.constant 0 : i32
    %2 = arith.cmpi ne, %1, %c0_i32_0 : i32
    scf.if %2 {
      %cst_16 = arith.constant 0.000000e+00 : f32
      %22 = vector.broadcast %cst_16 : f32 to vector<1x128xf32>
      %c0_17 = arith.constant 0 : index
      %c0_18 = arith.constant 0 : index
      %23 = vector.load %arg8[%c0_17, %c0_18] : memref<1x128xf32, #tpu.memory_space<vmem>>, vector<1x128xf32>
      tpu.vector_store %arg8[%c0_17, %c0_18], %22 {strides = array<i32>} : memref<1x128xf32, #tpu.memory_space<vmem>>, vector<1x128xf32>,
    } else {
    }
    %c0 = arith.constant 0 : index
    %c0_1 = arith.constant 0 : index
    %3 = vector.load %arg4[%c0, %c0_1] : memref<256x32xbf16, #tpu.memory_space<vmem>>, vector<256x32xbf16>
    %c0_2 = arith.constant 0 : index
    %c0_3 = arith.constant 0 : index
    %4 = vector.load %arg2[%c0_2, %c0_3] : memref<128x32xbf16, #tpu.memory_space<vmem>>, vector<128x32xbf16>
    %cst = arith.constant dense<0.000000e+00> : vector<256x128xf32>
    %5 = tpu.matmul %3, %4, %cst {dimension_numbers = #tpu.dot_dimension_numbers<[1], [1], [0], [0], [0, 0, 1, 0], [], []>} : vector<256x32xbf16>, vector<128x32xbf16>, vector<256x128xf32> -> vector<256x128xf32>
    %c0_4 = arith.constant 0 : index
    %c0_5 = arith.constant 0 : index
    %6 = vector.load %arg6[%c0_4, %c0_5] : memref<256x1xi32, #tpu.memory_space<vmem>>, vector<256x1xi32>
    %c0_6 = arith.constant 0 : index
    %c0_7 = arith.constant 0 : index
    %7 = vector.load %arg5[%c0_6, %c0_7] : memref<1x128xi32, #tpu.memory_space<vmem>>, vector<1x128xi32>
    %8 = vector.broadcast %6 : vector<256x1xi32> to vector<256x128xi32>
    %9 = vector.broadcast %7 : vector<1x128xi32> to vector<256x128xi32>
    %10 = arith.cmpi eq, %8, %9 : vector<256x128xi32>
    %11 = math.exp %5 : vector<256x128xf32>
    %cst_8 = arith.constant 0.000000e+00 : f32
    %12 = vector.broadcast %cst_8 : f32 to vector<256x128xf32>
    %13 = arith.select %10, %11, %12 : vector<256x128xi1>, vector<256x128xf32>
    %c0_9 = arith.constant 0 : index
    %c0_10 = arith.constant 0 : index
    %14 = vector.load %arg8[%c0_9, %c0_10] : memref<1x128xf32, #tpu.memory_space<vmem>>, vector<1x128xf32>
    %cst_11 = arith.constant dense<0.000000e+00> : vector<128xf32>
    %15 = vector.multi_reduction <add>, %13, %cst_11 [0] : vector<256x128xf32> to vector<128xf32>
    %16 = vector.shape_cast %15 : vector<128xf32> to vector<1x128xf32>
    %17 = arith.addf %14, %16 : vector<1x128xf32>
    %c0_12 = arith.constant 0 : index
    %c0_13 = arith.constant 0 : index
    %18 = vector.load %arg8[%c0_12, %c0_13] : memref<1x128xf32, #tpu.memory_space<vmem>>, vector<1x128xf32>
    tpu.vector_store %arg8[%c0_12, %c0_13], %17 {strides = array<i32>} : memref<1x128xf32, #tpu.memory_space<vmem>>, vector<1x128xf32>,
    %c0_i32_14 = arith.constant 0 : i32
    %19 = arith.cmpi eq, %arg1, %c0_i32_14 : i32
    %20 = arith.extui %19 : i1 to i32
    %c0_i32_15 = arith.constant 0 : i32
    %21 = arith.cmpi ne, %20, %c0_i32_15 : i32
    scf.if %21 {
      %c0_16 = arith.constant 0 : index
      %c0_17 = arith.constant 0 : index
      %22 = vector.load %arg2[%c0_16, %c0_17] : memref<128x32xbf16, #tpu.memory_space<vmem>>, vector<128x32xbf16>
      %23 = arith.extf %22 : vector<128x32xbf16> to vector<128x32xf32>
      %c0_18 = arith.constant 0 : index
      %c0_19 = arith.constant 0 : index
      %24 = vector.load %arg3[%c0_18, %c0_19] : memref<128x32xbf16, #tpu.memory_space<vmem>>, vector<128x32xbf16>
      %25 = arith.extf %24 : vector<128x32xbf16> to vector<128x32xf32>
      %cst_20 = arith.constant 1.000000e+00 : f32
      %26 = vector.broadcast %cst_20 : f32 to vector<1x32xf32>
      %27 = arith.mulf %23, %23 : vector<128x32xf32>
      %cst_21 = arith.constant dense<0.000000e+00> : vector<1x128xf32>
      %28 = tpu.matmul %26, %27, %cst_21 {dimension_numbers = #tpu.dot_dimension_numbers<[1], [1], [0], [0], [0, 0, 1, 0], [], []>} : vector<1x32xf32>, vector<128x32xf32>, vector<1x128xf32> -> vector<1x128xf32>
      %29 = arith.mulf %23, %25 : vector<128x32xf32>
      %cst_22 = arith.constant dense<0.000000e+00> : vector<1x128xf32>
      %30 = tpu.matmul %26, %29, %cst_22 {dimension_numbers = #tpu.dot_dimension_numbers<[1], [1], [0], [0], [0, 0, 1, 0], [], []>} : vector<1x32xf32>, vector<128x32xf32>, vector<1x128xf32> -> vector<1x128xf32>
      %c0_23 = arith.constant 0 : index
      %c0_24 = arith.constant 0 : index
      %31 = vector.load %arg8[%c0_23, %c0_24] : memref<1x128xf32, #tpu.memory_space<vmem>>, vector<1x128xf32>
      %32 = math.exp %28 : vector<1x128xf32>
      %33 = arith.subf %31, %32 : vector<1x128xf32>
      %34 = math.log %33 : vector<1x128xf32>
      %35 = arith.subf %34, %30 : vector<1x128xf32>
      %cst_25 = arith.constant 5.000000e-01 : f32
      %36 = vector.broadcast %cst_25 : f32 to vector<1x128xf32>
      %37 = arith.mulf %36, %35 : vector<1x128xf32>
      %c0_26 = arith.constant 0 : index
      %c0_27 = arith.constant 0 : index
      %38 = vector.load %arg5[%c0_26, %c0_27] : memref<1x128xi32, #tpu.memory_space<vmem>>, vector<1x128xi32>
      %c0_i32_28 = arith.constant 0 : i32
      %39 = vector.broadcast %c0_i32_28 : i32 to vector<1x128xi32>
      %40 = arith.cmpi sge, %38, %39 : vector<1x128xi32>
      %cst_29 = arith.constant 0.000000e+00 : f32
      %41 = vector.broadcast %cst_29 : f32 to vector<1x128xf32>
      %42 = arith.select %40, %37, %41 : vector<1x128xi1>, vector<1x128xf32>
      %c0_30 = arith.constant 0 : index
      %c0_31 = arith.constant 0 : index
      %43 = vector.load %arg7[%c0_30, %c0_31] : memref<1x128xf32, #tpu.memory_space<vmem>>, vector<1x128xf32>
      tpu.vector_store %arg7[%c0_30, %c0_31], %42 {strides = array<i32>} : memref<1x128xf32, #tpu.memory_space<vmem>>, vector<1x128xf32>,
    } else {
    }
    return
  }
  func.func @transform_0(%arg0: i32, %arg1: i32) -> (i32, i32) {
    %c0_i32 = arith.constant 0 : i32
    %c0_i32_0 = arith.constant 0 : i32
    return %arg0, %c0_i32 : i32, i32
  }
  func.func @transform_1(%arg0: i32, %arg1: i32) -> (i32, i32) {
    %c1_i32 = arith.constant 1 : i32
    %0 = arith.cmpi slt, %arg0, %c1_i32 : i32
    %c1_i32_0 = arith.constant 1 : i32
    %1 = arith.addi %arg0, %c1_i32_0 : i32
    %c1_i32_1 = arith.constant 1 : i32
    %2 = arith.subi %arg0, %c1_i32_1 : i32
    %3 = arith.select %0, %1, %2 : i32
    %c0_i32 = arith.constant 0 : i32
    %c0_i32_2 = arith.constant 0 : i32
    return %3, %c0_i32 : i32, i32
  }
  func.func @transform_2(%arg0: i32, %arg1: i32) -> (i32, i32) {
    %c0_i32 = arith.constant 0 : i32
    %c0_i32_0 = arith.constant 0 : i32
    return %arg1, %c0_i32 : i32, i32
  }
  func.func @transform_3(%arg0: i32, %arg1: i32) -> (i32, i32) {
    %c0_i32 = arith.constant 0 : i32
    %c0_i32_0 = arith.constant 0 : i32
    return %c0_i32, %arg0 : i32, i32
  }
  func.func @transform_4(%arg0: i32, %arg1: i32) -> (i32, i32) {
    %c0_i32 = arith.constant 0 : i32
    %c0_i32_0 = arith.constant 0 : i32
    return %arg1, %c0_i32 : i32, i32
  }
  func.func @transform_5(%arg0: i32, %arg1: i32) -> (i32, i32) {
    %c0_i32 = arith.constant 0 : i32
    %c0_i32_0 = arith.constant 0 : i32
    return %c0_i32, %arg0 : i32, i32
  }
}

</mosaic_0001>

<llo_original>
// kernel: _lambda_.2
$region0: #{_lambda_.2}
  #allocation0 [shape = 'u32[]', space=smem, size = 0x4, offset = 0x4, fixed_abs, tag = 'smem constant byte address 0x4 - core index']
  #allocation1 [shape = 'u32[144,128]{1,0:T(1,128)}', space=vmem, size = 0x12000, scoped, tag = 'internal scratch']
  %s0 = inlined_call_operand.vmem [shape: bf16[256,32], index: 0, kind: input, shape index: {}]
  %s1 = inlined_call_operand.vmem [shape: bf16[32,32], index: 1, kind: input, shape index: {}]
  %s2 = inlined_call_operand.vmem [shape: f32[1,32], index: 2, kind: input, shape index: {}]
  %s3 = inlined_call_operand.vmem [shape: bf16[32,32], index: 3, kind: input, shape index: {}]
  %s4 = inlined_call_operand.vmem [shape: f32[1,32], index: 4, kind: input, shape index: {}]
  %s5 = inlined_call_operand.vmem [shape: bf16[256,32], index: 5, kind: output, shape index: {}]
  %s6 = sld [smem:[#allocation0]]
  $region53: #{_lambda_.2} parent=0
    _
  %s8 = ssub.s32 1, %s6
  %s9 = scalar_select 0, %s8, %s6
  loop: start=0, step=1, limit=4
  $region2: #{_lambda_.2} parent=0 // loop_pre_header
    _
  $region3: #{_lambda_.2} parent=0 // loop_header
    %s11 = sphi 0, %s15
    %p12 = scmp.ge.s32.totalorder %s11, 4
    %s21 = sphi 0, %s23
    %s24 = sphi 0, %s21
    %s25 = sphi 0, %s24
    %s41 = sphi 0, %s25
    %s45 = sphi 0, %s45
    %s47 = sphi 0, %s45
    %s48 = sphi 0, %s47
    %s62 = sphi 0, %s48
    %s66 = sphi 0, %s66
    %s68 = sphi 0, %s66
    %s69 = sphi 0, %s68
    %s83 = sphi 0, %s69
    %s87 = sphi 0, %s87
    %s89 = sphi 0, %s87
    %s90 = sphi 0, %s89
    %s104 = sphi 0, %s90
    %s108 = sphi 0, %s108
    %s110 = sphi 0, %s108
    %s111 = sphi 0, %s110
    %s125 = sphi 0, %s111
    %s131 = sphi 0, %s133
    %s134 = sphi 0, %s131
    %s135 = sphi 0, %s134
    %s151 = sphi 0, %s135
  $region4: #{_lambda_.2} parent=0 // loop_header_branch
    %14 = sbr.rel (%p12) target = $region8
  $region5: #{_lambda_.2} parent=0 // loop_body
    %s16 = ssub.s32 %s11, 1
    %s17 = ssub.s32 %s11, 2
    %s18 = sadd.s32 %s11, 1
    %s19 = ssub.s32 %s11, %s18
    %p20 = scmp.eq.s32.totalorder %s19, 0
    %s22 = sadd.s32 %s21, 1
    %s23 = scalar_select %p20, %s21, %s22
    %p26 = pneg %p20
    %p27 = scmp.eq.s32.totalorder %s11, 1
    %p28 = por %p26, %p27
    %p29 = scmp.ne.s32.totalorder %s21, %s24
    %p30 = scmp.eq.s32.totalorder %s11, 0
    %p31 = por %p29, %p30
    %p32 = scmp.ne.s32.totalorder %s21, %s24
    %p33 = scmp.eq.s32.totalorder %s16, 1
    %p34 = por %p32, %p33
    %p35 = scmp.ne.s32.totalorder %s24, %s25
    %p36 = scmp.eq.s32.totalorder %s16, 0
    %p37 = por %p35, %p36
    %p38 = scmp.ne.s32.totalorder %s24, %s25
    %p39 = scmp.eq.s32.totalorder %s17, 1
    %p40 = por %p38, %p39
    %p42 = scmp.ne.s32.totalorder %s25, %s41
    %p43 = scmp.eq.s32.totalorder %s17, 0
    %p44 = por %p42, %p43
    %s46 = sadd.s32 %s45, 1
    %p49 = scmp.eq.s32.totalorder %s11, 1
    %p50 = scmp.ne.s32.totalorder %s45, %s47
    %p51 = scmp.eq.s32.totalorder %s11, 0
    %p52 = por %p50, %p51
    %p53 = scmp.ne.s32.totalorder %s45, %s47
    %p54 = scmp.eq.s32.totalorder %s16, 1
    %p55 = por %p53, %p54
    %p56 = scmp.ne.s32.totalorder %s47, %s48
    %p57 = scmp.eq.s32.totalorder %s16, 0
    %p58 = por %p56, %p57
    %p59 = scmp.ne.s32.totalorder %s47, %s48
    %p60 = scmp.eq.s32.totalorder %s17, 1
    %p61 = por %p59, %p60
    %p63 = scmp.ne.s32.totalorder %s48, %s62
    %p64 = scmp.eq.s32.totalorder %s17, 0
    %p65 = por %p63, %p64
    %s67 = sadd.s32 %s66, 1
    %p70 = scmp.eq.s32.totalorder %s11, 1
    %p71 = scmp.ne.s32.totalorder %s66, %s68
    %p72 = scmp.eq.s32.totalorder %s11, 0
    %p73 = por %p71, %p72
    %p74 = scmp.ne.s32.totalorder %s66, %s68
    %p75 = scmp.eq.s32.totalorder %s16, 1
    %p76 = por %p74, %p75
    %p77 = scmp.ne.s32.totalorder %s68, %s69
    %p78 = scmp.eq.s32.totalorder %s16, 0
    %p79 = por %p77, %p78
    %p80 = scmp.ne.s32.totalorder %s68, %s69
    %p81 = scmp.eq.s32.totalorder %s17, 1
    %p82 = por %p80, %p81
    %p84 = scmp.ne.s32.totalorder %s69, %s83
    %p85 = scmp.eq.s32.totalorder %s17, 0
    %p86 = por %p84, %p85
    %s88 = sadd.s32 %s87, 1
    %p91 = scmp.eq.s32.totalorder %s11, 1
    %p92 = scmp.ne.s32.totalorder %s87, %s89
    %p93 = scmp.eq.s32.totalorder %s11, 0
    %p94 = por %p92, %p93
    %p95 = scmp.ne.s32.totalorder %s87, %s89
    %p96 = scmp.eq.s32.totalorder %s16, 1
    %p97 = por %p95, %p96
    %p98 = scmp.ne.s32.totalorder %s89, %s90
    %p99 = scmp.eq.s32.totalorder %s16, 0
    %p100 = por %p98, %p99
    %p101 = scmp.ne.s32.totalorder %s89, %s90
    %p102 = scmp.eq.s32.totalorder %s17, 1
    %p103 = por %p101, %p102
    %p105 = scmp.ne.s32.totalorder %s90, %s104
    %p106 = scmp.eq.s32.totalorder %s17, 0
    %p107 = por %p105, %p106
    %s109 = sadd.s32 %s108, 1
    %p112 = scmp.eq.s32.totalorder %s11, 1
    %p113 = scmp.ne.s32.totalorder %s108, %s110
    %p114 = scmp.eq.s32.totalorder %s11, 0
    %p115 = por %p113, %p114
    %p116 = scmp.ne.s32.totalorder %s108, %s110
    %p117 = scmp.eq.s32.totalorder %s16, 1
    %p118 = por %p116, %p117
    %p119 = scmp.ne.s32.totalorder %s110, %s111
    %p120 = scmp.eq.s32.totalorder %s16, 0
    %p121 = por %p119, %p120
    %p122 = scmp.ne.s32.totalorder %s110, %s111
    %p123 = scmp.eq.s32.totalorder %s17, 1
    %p124 = por %p122, %p123
    %p126 = scmp.ne.s32.totalorder %s111, %s125
    %p127 = scmp.eq.s32.totalorder %s17, 0
    %p128 = por %p126, %p127
    %s129 = ssub.s32 %s11, %s18
    %p130 = scmp.eq.s32.totalorder %s129, 0
    %s132 = sadd.s32 %s131, 1
    %s133 = scalar_select %p130, %s131, %s132
    %p136 = pneg %p130
    %p137 = scmp.eq.s32.totalorder %s11, 1
    %p138 = por %p136, %p137
    %p139 = scmp.ne.s32.totalorder %s131, %s134
    %p140 = scmp.eq.s32.totalorder %s11, 0
    %p141 = por %p139, %p140
    %p142 = scmp.ne.s32.totalorder %s131, %s134
    %p143 = scmp.eq.s32.totalorder %s16, 1
    %p144 = por %p142, %p143
    %p145 = scmp.ne.s32.totalorder %s134, %s135
    %p146 = scmp.eq.s32.totalorder %s16, 0
    %p147 = por %p145, %p146
    %p148 = scmp.ne.s32.totalorder %s134, %s135
    %p149 = scmp.eq.s32.totalorder %s17, 1
    %p150 = por %p148, %p149
    %p152 = scmp.ne.s32.totalorder %s135, %s151
    %p153 = scmp.eq.s32.totalorder %s17, 0
    %p154 = por %p152, %p153
    %p155 = scmp.le.s32.totalorder 1, %s11
    %p156 = scmp.lt.s32.totalorder %s11, 3
    %p157 = pnand %p155, %p156
    %p158 = pneg %p157
    // Predicated region
    $region9: #{_lambda_.2} parent=5 // pred_check
      _
    $region10: #{_lambda_.2} parent=5 // pred_check_branch
      %160 = sbr.rel (%p157) target = $region12
    $region11: #{_lambda_.2} parent=5 // pred_region
      %s161 = ssub.s32 %s11, 1
      // Predicated region
      $region13: #{_lambda_.2} parent=11 // pred_check
        %p162 = pneg %p58
      $region14: #{_lambda_.2} parent=11 // pred_check_branch
        %164 = sbr.rel (%p162) target = $region16
      $region15: #{_lambda_.2} parent=11 // pred_region
        _
      $region16: #{_lambda_.2} parent=11 // pred_fallthru
        _
      // Predicated region
      $region17: #{_lambda_.2} parent=11 // pred_check
        %p165 = pneg %p79
      $region18: #{_lambda_.2} parent=11 // pred_check_branch
        %167 = sbr.rel (%p165) target = $region20
      $region19: #{_lambda_.2} parent=11 // pred_region
        _
      $region20: #{_lambda_.2} parent=11 // pred_fallthru
        _
      // Predicated region
      $region21: #{_lambda_.2} parent=11 // pred_check
        %p168 = pneg %p100
      $region22: #{_lambda_.2} parent=11 // pred_check_branch
        %170 = sbr.rel (%p168) target = $region24
      $region23: #{_lambda_.2} parent=11 // pred_region
        _
      $region24: #{_lambda_.2} parent=11 // pred_fallthru
        _
      // Predicated region
      $region25: #{_lambda_.2} parent=11 // pred_check
        %p171 = pneg %p121
      $region26: #{_lambda_.2} parent=11 // pred_check_branch
        %173 = sbr.rel (%p171) target = $region28
      $region27: #{_lambda_.2} parent=11 // pred_region
        _
      $region28: #{_lambda_.2} parent=11 // pred_fallthru
        _
    $region12: #{_lambda_.2} parent=5 // pred_fallthru
      _
    %p174 = scmp.lt.s32.totalorder %s11, 2
    // Predicated region
    $region29: #{_lambda_.2} parent=5 // pred_check
      %p175 = pneg %p174
    $region30: #{_lambda_.2} parent=5 // pred_check_branch
      %177 = sbr.rel (%p175) target = $region32
    $region31: #{_lambda_.2} parent=5 // pred_region
      // Predicated region
      $region33: #{_lambda_.2} parent=31 // pred_check
        %p178 = pneg %p31
      $region34: #{_lambda_.2} parent=31 // pred_check_branch
        %180 = sbr.rel (%p178) target = $region36
      $region35: #{_lambda_.2} parent=31 // pred_region
        %s181 = smul.u32 16, %s11
        %p182 = scmp.lt.s32.totalorder %s181, 31
        %s183 = scalar_select %p182, %s181, 31
        %s184 = smul.addr %s183, 4
        %s185 = scalar_lea.vmem %s0, %s184
        %s186 = smul.u32 16, %s11
      $region36: #{_lambda_.2} parent=31 // pred_fallthru
        _
    $region32: #{_lambda_.2} parent=5 // pred_fallthru
      _
    %p187 = scmp.le.s32.totalorder 1, %s11
    %p188 = scmp.lt.s32.totalorder %s11, 3
    %p189 = pnand %p187, %p188
    %p190 = pneg %p189
    // Predicated region
    $region37: #{_lambda_.2} parent=5 // pred_check
      _
    $region38: #{_lambda_.2} parent=5 // pred_check_branch
      %192 = sbr.rel (%p189) target = $region40
    $region39: #{_lambda_.2} parent=5 // pred_region
      %s193 = ssub.s32 %s11, 1
      %s194 = smul.u32 16, %s16
      %p195 = scmp.lt.s32.totalorder %s194, 31
      %s196 = scalar_select %p195, %s194, 31
      %s197 = smul.addr %s196, 4
      %s198 = scalar_lea.vmem %s0, %s197
      %p199 = pneg %p37
      %p200 = pneg %p34
      %p201 = pneg %p58
      %p202 = pneg %p55
      %p203 = pneg %p79
      %p204 = pneg %p76
      %p205 = pneg %p100
      %p206 = pneg %p97
      %p207 = pneg %p121
      %p208 = pneg %p118
      %p209 = pneg %p147
      %p210 = pneg %p144
      %s211 = smul.u32 16, %s16
      %p212 = scmp.lt.s32.totalorder %s211, 31
      %s213 = scalar_select %p212, %s211, 31
      %s214 = smul.addr %s213, 4
      %s215 = scalar_lea.vmem %s5, %s214
      %s216 = smul.u32 16, %s16
      %p217 = scmp.lt.s32.totalorder %s216, 31
      %s218 = scalar_select %p217, %s216, 31
      %s219 = smul.addr %s218, 4
      %s220 = scalar_lea.vmem %s0, %s219
      %s221 = smul.u32 16, %s16
      %s222 = smul.u32 16, %s16
      %p223 = scmp.lt.s32.totalorder %s222, 31
      %s224 = scalar_select %p223, %s222, 31
      %s225 = smul.addr %s224, 4
      %s226 = scalar_lea.vmem %s5, %s225
      %s227 = smul.u32 16, %s16
      %v229 = vld [vmem:[%s220] sm:$0xf]
      %v230 = vld [vmem:[%s220 + $0x4] sm:$0xf]
      %v231 = vld [vmem:[%s220 + $0x8] sm:$0xf]
      %v232 = vld [vmem:[%s220 + $0xc] sm:$0xf]
      %v233 = vld [vmem:[%s220 + $0x10] sm:$0xf]
      %v234 = vld [vmem:[%s220 + $0x14] sm:$0xf]
      %v235 = vld [vmem:[%s220 + $0x18] sm:$0xf]
      %v236 = vld [vmem:[%s220 + $0x1c] sm:$0xf]
      %v237 = vld [vmem:[%s220 + $0x20] sm:$0xf]
      %v238 = vld [vmem:[%s220 + $0x24] sm:$0xf]
      %v239 = vld [vmem:[%s220 + $0x28] sm:$0xf]
      %v240 = vld [vmem:[%s220 + $0x2c] sm:$0xf]
      %v241 = vld [vmem:[%s220 + $0x30] sm:$0xf]
      %v242 = vld [vmem:[%s220 + $0x34] sm:$0xf]
      %v243 = vld [vmem:[%s220 + $0x38] sm:$0xf]
      %v244 = vld [vmem:[%s220 + $0x3c] sm:$0xf]
      %v245 = vld [vmem:[%s1] sm:$0xf]
      %v246 = vld [vmem:[%s1 + $0x4] sm:$0xf]
      %v247 = vld [vmem:[%s1 + $0x8] sm:$0xf]
      %v248 = vld [vmem:[%s1 + $0xc] sm:$0xf]
      %v249 = vld [vmem:[%s2] sm:$0x1]
      %v251 = vlaneseq
      %v252 = vshrl.u32 %v251, 7
      %v253 = vsub.s32 0, %v252
      %v254 = vrot.slane %v249, %v253
      %v272 = vunpack.c.l.b16 %v229
      %v273 = vunpack.c.l.b16 %v230
      %v274 = vunpack.c.l.b16 %v231
      %v275 = vunpack.c.l.b16 %v232
      %v276 = vunpack.c.l.b16 %v233
      %v277 = vunpack.c.l.b16 %v234
      %v278 = vunpack.c.l.b16 %v235
      %v279 = vunpack.c.l.b16 %v236
      %v280 = vunpack.c.l.b16 %v237
      %v281 = vunpack.c.l.b16 %v238
      %v282 = vunpack.c.l.b16 %v239
      %v283 = vunpack.c.l.b16 %v240
      %v284 = vunpack.c.l.b16 %v241
      %v285 = vunpack.c.l.b16 %v242
      %v286 = vunpack.c.l.b16 %v243
      %v287 = vunpack.c.l.b16 %v244
      %v288 = vpack.c.b16 %v273, %v272
      %v289 = vpack.c.b16 %v275, %v274
      %v290 = vpack.c.b16 %v277, %v276
      %v291 = vpack.c.b16 %v279, %v278
      %v292 = vpack.c.b16 %v281, %v280
      %v293 = vpack.c.b16 %v283, %v282
      %v294 = vpack.c.b16 %v285, %v284
      %v295 = vpack.c.b16 %v287, %v286
      %v300 = vunpack.c.l.b16 %v245
      %v301 = vunpack.c.l.b16 %v246
      %v302 = vunpack.c.l.b16 %v247
      %v303 = vunpack.c.l.b16 %v248
      %v304 = vpack.c.b16 %v301, %v300
      %v305 = vpack.c.b16 %v303, %v302
      %vm308 = vcmask 261120
      %v310 = vsel %vm308, %v288, 0
      %v313 = vsel %vm308, %v289, 0
      %v316 = vsel %vm308, %v290, 0
      %v319 = vsel %vm308, %v291, 0
      %v322 = vsel %vm308, %v292, 0
      %v325 = vsel %vm308, %v293, 0
      %v328 = vsel %vm308, %v294, 0
      %v331 = vsel %vm308, %v295, 0
      %333 = vmatprep.subr.bf16.mxu0 0
      %334 = vmatpush1.bf16.msra.mxu0 %v304
      %335 = vmatprep.subr.bf16.mxu0 0
      %336 = vmatpush1.bf16.msra.mxu0 %v305
      %337 = vmatprep.subr.bf16.mxu0 0
      %338 = vmatpush1.bf16.msra.mxu0 0
      %339 = vmatprep.subr.bf16.mxu0 0
      %340 = vmatpush1.bf16.msra.mxu0 0
      %341 = vmatprep.subr.bf16.mxu0 0
      %342 = vmatpush1.bf16.msra.mxu0 0
      %343 = vmatprep.subr.bf16.mxu0 0
      %344 = vmatpush1.bf16.msra.mxu0 0
      %345 = vmatprep.subr.bf16.mxu0 0
      %346 = vmatpush1.bf16.msra.mxu0 0
      %347 = vmatprep.subr.bf16.mxu0 0
      %348 = vmatpush1.bf16.msra.mxu0 0
      %349 = vmatprep.subr.bf16.mxu0 0
      %350 = vmatpush1.bf16.msra.mxu0 0
      %351 = vmatprep.subr.bf16.mxu0 0
      %352 = vmatpush1.bf16.msra.mxu0 0
      %353 = vmatprep.subr.bf16.mxu0 0
      %354 = vmatpush1.bf16.msra.mxu0 0
      %355 = vmatprep.subr.bf16.mxu0 0
      %356 = vmatpush1.bf16.msra.mxu0 0
      %357 = vmatprep.subr.bf16.mxu0 0
      %358 = vmatpush1.bf16.msra.mxu0 0
      %359 = vmatprep.subr.bf16.mxu0 0
      %360 = vmatpush1.bf16.msra.mxu0 0
      %361 = vmatprep.subr.bf16.mxu0 0
      %362 = vmatpush1.bf16.msra.mxu0 0
      %363 = vmatprep.subr.bf16.mxu0 0
      %364 = vmatpush1.bf16.msra.mxu0 0
      %365 = vmatprep.mubr.bf16.mxu0 0
      %366 = vmatmul.mubr.bf16.gmra.mrb[0].mxu0 %v310
      %v367 = vpop.f32.mrb[0].mxu0
      %v368 = vadd.f32 %v254, %v367
      %v369 = vpop.f32.mrb[0].mxu0
      %v370 = vpop.f32.mrb[0].mxu0
      %v371 = vadd.f32 %v254, %v370
      %v372 = vpop.f32.mrb[0].mxu0
      %373 = vmatprep.mubr.bf16.mxu0 0
      %374 = vmatmul.mubr.bf16.gmra.mrb[0].mxu0 %v313
      %v375 = vpop.f32.mrb[0].mxu0
      %v376 = vadd.f32 %v254, %v375
      %v377 = vpop.f32.mrb[0].mxu0
      %v378 = vpop.f32.mrb[0].mxu0
      %v379 = vadd.f32 %v254, %v378
      %v380 = vpop.f32.mrb[0].mxu0
      %381 = vmatprep.mubr.bf16.mxu0 0
      %382 = vmatmul.mubr.bf16.gmra.mrb[0].mxu0 %v316
      %v383 = vpop.f32.mrb[0].mxu0
      %v384 = vadd.f32 %v254, %v383
      %v385 = vpop.f32.mrb[0].mxu0
      %v386 = vpop.f32.mrb[0].mxu0
      %v387 = vadd.f32 %v254, %v386
      %v388 = vpop.f32.mrb[0].mxu0
      %389 = vmatprep.mubr.bf16.mxu0 0
      %390 = vmatmul.mubr.bf16.gmra.mrb[0].mxu0 %v319
      %v391 = vpop.f32.mrb[0].mxu0
      %v392 = vadd.f32 %v254, %v391
      %v393 = vpop.f32.mrb[0].mxu0
      %v394 = vpop.f32.mrb[0].mxu0
      %v395 = vadd.f32 %v254, %v394
      %v396 = vpop.f32.mrb[0].mxu0
      %397 = vmatprep.mubr.bf16.mxu0 0
      %398 = vmatmul.mubr.bf16.gmra.mrb[0].mxu0 %v322
      %v399 = vpop.f32.mrb[0].mxu0
      %v400 = vadd.f32 %v254, %v399
      %v401 = vpop.f32.mrb[0].mxu0
      %v402 = vpop.f32.mrb[0].mxu0
      %v403 = vadd.f32 %v254, %v402
      %v404 = vpop.f32.mrb[0].mxu0
      %405 = vmatprep.mubr.bf16.mxu0 0
      %406 = vmatmul.mubr.bf16.gmra.mrb[0].mxu0 %v325
      %v407 = vpop.f32.mrb[0].mxu0
      %v408 = vadd.f32 %v254, %v407
      %v409 = vpop.f32.mrb[0].mxu0
      %v410 = vpop.f32.mrb[0].mxu0
      %v411 = vadd.f32 %v254, %v410
      %v412 = vpop.f32.mrb[0].mxu0
      %413 = vmatprep.mubr.bf16.mxu0 0
      %414 = vmatmul.mubr.bf16.gmra.mrb[0].mxu0 %v328
      %v415 = vpop.f32.mrb[0].mxu0
      %v416 = vadd.f32 %v254, %v415
      %v417 = vpop.f32.mrb[0].mxu0
      %v418 = vpop.f32.mrb[0].mxu0
      %v419 = vadd.f32 %v254, %v418
      %v420 = vpop.f32.mrb[0].mxu0
      %421 = vmatprep.mubr.bf16.mxu0 0
      %422 = vmatmul.mubr.bf16.gmra.mrb[0].mxu0 %v331
      %v423 = vpop.f32.mrb[0].mxu0
      %v424 = vadd.f32 %v254, %v423
      %v425 = vpop.f32.mrb[0].mxu0
      %v426 = vpop.f32.mrb[0].mxu0
      %v427 = vadd.f32 %v254, %v426
      %v428 = vpop.f32.mrb[0].mxu0
      %429 = vdwg.mxu0
      %vm430 = vcmp.gt.f32.partialorder %v368, 0.0
      %vm431 = vcmp.gt.f32.partialorder %v371, 0.0
      %vm432 = vcmp.gt.f32.partialorder %v376, 0.0
      %vm433 = vcmp.gt.f32.partialorder %v379, 0.0
      %vm434 = vcmp.gt.f32.partialorder %v384, 0.0
      %vm435 = vcmp.gt.f32.partialorder %v387, 0.0
      %vm436 = vcmp.gt.f32.partialorder %v392, 0.0
      %vm437 = vcmp.gt.f32.partialorder %v395, 0.0
      %vm438 = vcmp.gt.f32.partialorder %v400, 0.0
      %vm439 = vcmp.gt.f32.partialorder %v403, 0.0
      %vm440 = vcmp.gt.f32.partialorder %v408, 0.0
      %vm441 = vcmp.gt.f32.partialorder %v411, 0.0
      %vm442 = vcmp.gt.f32.partialorder %v416, 0.0
      %vm443 = vcmp.gt.f32.partialorder %v419, 0.0
      %vm444 = vcmp.gt.f32.partialorder %v424, 0.0
      %vm445 = vcmp.gt.f32.partialorder %v427, 0.0
      %v446 = vmin.f32 %v368, 0.0
      %v447 = vmin.f32 %v371, 0.0
      %v448 = vmin.f32 %v376, 0.0
      %v449 = vmin.f32 %v379, 0.0
      %v450 = vmin.f32 %v384, 0.0
      %v451 = vmin.f32 %v387, 0.0
      %v452 = vmin.f32 %v392, 0.0
      %v453 = vmin.f32 %v395, 0.0
      %v454 = vmin.f32 %v400, 0.0
      %v455 = vmin.f32 %v403, 0.0
      %v456 = vmin.f32 %v408, 0.0
      %v457 = vmin.f32 %v411, 0.0
      %v458 = vmin.f32 %v416, 0.0
      %v459 = vmin.f32 %v419, 0.0
      %v460 = vmin.f32 %v424, 0.0
      %v461 = vmin.f32 %v427, 0.0
      %v462 = vmul.f32 %v446, 1.442695
      %v463 = vpow.pop %v462
      %v464 = vmul.f32 %v447, 1.442695
      %v465 = vpow.pop %v464
      %v466 = vmul.f32 %v448, 1.442695
      %v467 = vpow.pop %v466
      %v468 = vmul.f32 %v449, 1.442695
      %v469 = vpow.pop %v468
      %v470 = vmul.f32 %v450, 1.442695
      %v471 = vpow.pop %v470
      %v472 = vmul.f32 %v451, 1.442695
      %v473 = vpow.pop %v472
      %v474 = vmul.f32 %v452, 1.442695
      %v475 = vpow.pop %v474
      %v476 = vmul.f32 %v453, 1.442695
      %v477 = vpow.pop %v476
      %v478 = vmul.f32 %v454, 1.442695
      %v479 = vpow.pop %v478
      %v480 = vmul.f32 %v455, 1.442695
      %v481 = vpow.pop %v480
      %v482 = vmul.f32 %v456, 1.442695
      %v483 = vpow.pop %v482
      %v484 = vmul.f32 %v457, 1.442695
      %v485 = vpow.pop %v484
      %v486 = vmul.f32 %v458, 1.442695
      %v487 = vpow.pop %v486
      %v488 = vmul.f32 %v459, 1.442695
      %v489 = vpow.pop %v488
      %v490 = vmul.f32 %v460, 1.442695
      %v491 = vpow.pop %v490
      %v492 = vmul.f32 %v461, 1.442695
      %v493 = vpow.pop %v492
      %v494 = vsub.f32 %v463, 1.0
      %v495 = vsub.f32 %v465, 1.0
      %v496 = vsub.f32 %v467, 1.0
      %v497 = vsub.f32 %v469, 1.0
      %v498 = vsub.f32 %v471, 1.0
      %v499 = vsub.f32 %v473, 1.0
      %v500 = vsub.f32 %v475, 1.0
      %v501 = vsub.f32 %v477, 1.0
      %v502 = vsub.f32 %v479, 1.0
      %v503 = vsub.f32 %v481, 1.0
      %v504 = vsub.f32 %v483, 1.0
      %v505 = vsub.f32 %v485, 1.0
      %v506 = vsub.f32 %v487, 1.0
      %v507 = vsub.f32 %v489, 1.0
      %v508 = vsub.f32 %v491, 1.0
      %v509 = vsub.f32 %v493, 1.0
      %v510 = vsel %vm430, %v368, %v494
      %v511 = vsel %vm431, %v371, %v495
      %v512 = vsel %vm432, %v376, %v496
      %v513 = vsel %vm433, %v379, %v497
      %v514 = vsel %vm434, %v384, %v498
      %v515 = vsel %vm435, %v387, %v499
      %v516 = vsel %vm436, %v392, %v500
      %v517 = vsel %vm437, %v395, %v501
      %v518 = vsel %vm438, %v400, %v502
      %v519 = vsel %vm439, %v403, %v503
      %v520 = vsel %vm440, %v408, %v504
      %v521 = vsel %vm441, %v411, %v505
      %v522 = vsel %vm442, %v416, %v506
      %v523 = vsel %vm443, %v419, %v507
      %v524 = vsel %vm444, %v424, %v508
      %v525 = vsel %vm445, %v427, %v509
      %v526 = vpack.c.bf16 %v511, %v510
      %v527 = vpack.c.bf16 %v513, %v512
      %v528 = vpack.c.bf16 %v515, %v514
      %v529 = vpack.c.bf16 %v517, %v516
      %v530 = vpack.c.bf16 %v519, %v518
      %v531 = vpack.c.bf16 %v521, %v520
      %v532 = vpack.c.bf16 %v523, %v522
      %v533 = vpack.c.bf16 %v525, %v524
      %v534 = vld [vmem:[%s3] sm:$0xf]
      %v535 = vld [vmem:[%s3 + $0x4] sm:$0xf]
      %v536 = vld [vmem:[%s3 + $0x8] sm:$0xf]
      %v537 = vld [vmem:[%s3 + $0xc] sm:$0xf]
      %v538 = vld [vmem:[%s4] sm:$0x1]
      %v540 = vlaneseq
      %v541 = vshrl.u32 %v540, 7
      %v542 = vsub.s32 0, %v541
      %v543 = vrot.slane %v538, %v542
      %v549 = vunpack.c.l.b16 %v534
      %v550 = vunpack.c.l.b16 %v535
      %v551 = vunpack.c.l.b16 %v536
      %v552 = vunpack.c.l.b16 %v537
      %v553 = vpack.c.b16 %v550, %v549
      %v554 = vpack.c.b16 %v552, %v551
      %v558 = vsel %vm308, %v526, 0
      %v561 = vsel %vm308, %v527, 0
      %v564 = vsel %vm308, %v528, 0
      %v567 = vsel %vm308, %v529, 0
      %v570 = vsel %vm308, %v530, 0
      %v573 = vsel %vm308, %v531, 0
      %v576 = vsel %vm308, %v532, 0
      %v579 = vsel %vm308, %v533, 0
      %581 = vmatprep.subr.bf16.mxu0 0
      %582 = vmatpush1.bf16.msra.mxu0 %v553
      %583 = vmatprep.subr.bf16.mxu0 0
      %584 = vmatpush1.bf16.msra.mxu0 %v554
      %585 = vmatprep.subr.bf16.mxu0 0
      %586 = vmatpush1.bf16.msra.mxu0 0
      %587 = vmatprep.subr.bf16.mxu0 0
      %588 = vmatpush1.bf16.msra.mxu0 0
      %589 = vmatprep.subr.bf16.mxu0 0
      %590 = vmatpush1.bf16.msra.mxu0 0
      %591 = vmatprep.subr.bf16.mxu0 0
      %592 = vmatpush1.bf16.msra.mxu0 0
      %593 = vmatprep.subr.bf16.mxu0 0
      %594 = vmatpush1.bf16.msra.mxu0 0
      %595 = vmatprep.subr.bf16.mxu0 0
      %596 = vmatpush1.bf16.msra.mxu0 0
      %597 = vmatprep.subr.bf16.mxu0 0
      %598 = vmatpush1.bf16.msra.mxu0 0
      %599 = vmatprep.subr.bf16.mxu0 0
      %600 = vmatpush1.bf16.msra.mxu0 0
      %601 = vmatprep.subr.bf16.mxu0 0
      %602 = vmatpush1.bf16.msra.mxu0 0
      %603 = vmatprep.subr.bf16.mxu0 0
      %604 = vmatpush1.bf16.msra.mxu0 0
      %605 = vmatprep.subr.bf16.mxu0 0
      %606 = vmatpush1.bf16.msra.mxu0 0
      %607 = vmatprep.subr.bf16.mxu0 0
      %608 = vmatpush1.bf16.msra.mxu0 0
      %609 = vmatprep.subr.bf16.mxu0 0
      %610 = vmatpush1.bf16.msra.mxu0 0
      %611 = vmatprep.subr.bf16.mxu0 0
      %612 = vmatpush1.bf16.msra.mxu0 0
      %613 = vmatprep.mubr.bf16.mxu0 0
      %614 = vmatmul.mubr.bf16.gmra.mrb[0].mxu0 %v558
      %v615 = vpop.f32.mrb[0].mxu0
      %v616 = vadd.f32 %v543, %v615
      %v617 = vpop.f32.mrb[0].mxu0
      %v618 = vpop.f32.mrb[0].mxu0
      %v619 = vadd.f32 %v543, %v618
      %v620 = vpop.f32.mrb[0].mxu0
      %621 = vmatprep.mubr.bf16.mxu0 0
      %622 = vmatmul.mubr.bf16.gmra.mrb[0].mxu0 %v561
      %v623 = vpop.f32.mrb[0].mxu0
      %v624 = vadd.f32 %v543, %v623
      %v625 = vpop.f32.mrb[0].mxu0
      %v626 = vpop.f32.mrb[0].mxu0
      %v627 = vadd.f32 %v543, %v626
      %v628 = vpop.f32.mrb[0].mxu0
      %629 = vmatprep.mubr.bf16.mxu0 0
      %630 = vmatmul.mubr.bf16.gmra.mrb[0].mxu0 %v564
      %v631 = vpop.f32.mrb[0].mxu0
      %v632 = vadd.f32 %v543, %v631
      %v633 = vpop.f32.mrb[0].mxu0
      %v634 = vpop.f32.mrb[0].mxu0
      %v635 = vadd.f32 %v543, %v634
      %v636 = vpop.f32.mrb[0].mxu0
      %637 = vmatprep.mubr.bf16.mxu0 0
      %638 = vmatmul.mubr.bf16.gmra.mrb[0].mxu0 %v567
      %v639 = vpop.f32.mrb[0].mxu0
      %v640 = vadd.f32 %v543, %v639
      %v641 = vpop.f32.mrb[0].mxu0
      %v642 = vpop.f32.mrb[0].mxu0
      %v643 = vadd.f32 %v543, %v642
      %v644 = vpop.f32.mrb[0].mxu0
      %645 = vmatprep.mubr.bf16.mxu0 0
      %646 = vmatmul.mubr.bf16.gmra.mrb[0].mxu0 %v570
      %v647 = vpop.f32.mrb[0].mxu0
      %v648 = vadd.f32 %v543, %v647
      %v649 = vpop.f32.mrb[0].mxu0
      %v650 = vpop.f32.mrb[0].mxu0
      %v651 = vadd.f32 %v543, %v650
      %v652 = vpop.f32.mrb[0].mxu0
      %653 = vmatprep.mubr.bf16.mxu0 0
      %654 = vmatmul.mubr.bf16.gmra.mrb[0].mxu0 %v573
      %v655 = vpop.f32.mrb[0].mxu0
      %v656 = vadd.f32 %v543, %v655
      %v657 = vpop.f32.mrb[0].mxu0
      %v658 = vpop.f32.mrb[0].mxu0
      %v659 = vadd.f32 %v543, %v658
      %v660 = vpop.f32.mrb[0].mxu0
      %661 = vmatprep.mubr.bf16.mxu0 0
      %662 = vmatmul.mubr.bf16.gmra.mrb[0].mxu0 %v576
      %v663 = vpop.f32.mrb[0].mxu0
      %v664 = vadd.f32 %v543, %v663
      %v665 = vpop.f32.mrb[0].mxu0
      %v666 = vpop.f32.mrb[0].mxu0
      %v667 = vadd.f32 %v543, %v666
      %v668 = vpop.f32.mrb[0].mxu0
      %669 = vmatprep.mubr.bf16.mxu0 0
      %670 = vmatmul.mubr.bf16.gmra.mrb[0].mxu0 %v579
      %v671 = vpop.f32.mrb[0].mxu0
      %v672 = vadd.f32 %v543, %v671
      %v673 = vpop.f32.mrb[0].mxu0
      %v674 = vpop.f32.mrb[0].mxu0
      %v675 = vadd.f32 %v543, %v674
      %v676 = vpop.f32.mrb[0].mxu0
      %677 = vdwg.mxu0
      %v678 = vmul.f32 %v616, %v616
      %v679 = vmul.f32 %v619, %v619
      %v680 = vmul.f32 %v624, %v624
      %v681 = vmul.f32 %v627, %v627
      %v682 = vmul.f32 %v632, %v632
      %v683 = vmul.f32 %v635, %v635
      %v684 = vmul.f32 %v640, %v640
      %v685 = vmul.f32 %v643, %v643
      %v686 = vmul.f32 %v648, %v648
      %v687 = vmul.f32 %v651, %v651
      %v688 = vmul.f32 %v656, %v656
      %v689 = vmul.f32 %v659, %v659
      %v690 = vmul.f32 %v664, %v664
      %v691 = vmul.f32 %v667, %v667
      %v692 = vmul.f32 %v672, %v672
      %v693 = vmul.f32 %v675, %v675
      %v694 = vsel %vm308, %v678, 0.0
      %695 = vadd.xlane.f32.xlu0 %v694
      %v696 = vpop.xlane.xlu0 %695
      %v697 = vsel %vm308, %v679, 0.0
      %698 = vadd.xlane.f32.xlu0 %v697
      %v699 = vpop.xlane.xlu0 %698
      %v700 = vsel %vm308, %v680, 0.0
      %701 = vadd.xlane.f32.xlu0 %v700
      %v702 = vpop.xlane.xlu0 %701
      %v703 = vsel %vm308, %v681, 0.0
      %704 = vadd.xlane.f32.xlu0 %v703
      %v705 = vpop.xlane.xlu0 %704
      %v706 = vsel %vm308, %v682, 0.0
      %707 = vadd.xlane.f32.xlu0 %v706
      %v708 = vpop.xlane.xlu0 %707
      %v709 = vsel %vm308, %v683, 0.0
      %710 = vadd.xlane.f32.xlu0 %v709
      %v711 = vpop.xlane.xlu0 %710
      %v712 = vsel %vm308, %v684, 0.0
      %713 = vadd.xlane.f32.xlu0 %v712
      %v714 = vpop.xlane.xlu0 %713
      %v715 = vsel %vm308, %v685, 0.0
      %716 = vadd.xlane.f32.xlu0 %v715
      %v717 = vpop.xlane.xlu0 %716
      %v718 = vsel %vm308, %v686, 0.0
      %719 = vadd.xlane.f32.xlu0 %v718
      %v720 = vpop.xlane.xlu0 %719
      %v721 = vsel %vm308, %v687, 0.0
      %722 = vadd.xlane.f32.xlu0 %v721
      %v723 = vpop.xlane.xlu0 %722
      %v724 = vsel %vm308, %v688, 0.0
      %725 = vadd.xlane.f32.xlu0 %v724
      %v726 = vpop.xlane.xlu0 %725
      %v727 = vsel %vm308, %v689, 0.0
      %728 = vadd.xlane.f32.xlu0 %v727
      %v729 = vpop.xlane.xlu0 %728
      %v730 = vsel %vm308, %v690, 0.0
      %731 = vadd.xlane.f32.xlu0 %v730
      %v732 = vpop.xlane.xlu0 %731
      %v733 = vsel %vm308, %v691, 0.0
      %734 = vadd.xlane.f32.xlu0 %v733
      %v735 = vpop.xlane.xlu0 %734
      %v736 = vsel %vm308, %v692, 0.0
      %737 = vadd.xlane.f32.xlu0 %v736
      %v738 = vpop.xlane.xlu0 %737
      %v739 = vsel %vm308, %v693, 0.0
      %740 = vadd.xlane.f32.xlu0 %v739
      %v741 = vpop.xlane.xlu0 %740
      %v742 = vmax.f32 %v696, 1e-24
      %v743 = vmax.f32 %v699, 1e-24
      %v744 = vmax.f32 %v702, 1e-24
      %v745 = vmax.f32 %v705, 1e-24
      %v746 = vmax.f32 %v708, 1e-24
      %v747 = vmax.f32 %v711, 1e-24
      %v748 = vmax.f32 %v714, 1e-24
      %v749 = vmax.f32 %v717, 1e-24
      %v750 = vmax.f32 %v720, 1e-24
      %v751 = vmax.f32 %v723, 1e-24
      %v752 = vmax.f32 %v726, 1e-24
      %v753 = vmax.f32 %v729, 1e-24
      %v754 = vmax.f32 %v732, 1e-24
      %v755 = vmax.f32 %v735, 1e-24
      %v756 = vmax.f32 %v738, 1e-24
      %v757 = vmax.f32 %v741, 1e-24
      %v758 = vmul.f32 %v742, 0.5
      %v759 = vmul.f32 %v743, 0.5
      %v760 = vmul.f32 %v744, 0.5
      %v761 = vmul.f32 %v745, 0.5
      %v762 = vmul.f32 %v746, 0.5
      %v763 = vmul.f32 %v747, 0.5
      %v764 = vmul.f32 %v748, 0.5
      %v765 = vmul.f32 %v749, 0.5
      %v766 = vmul.f32 %v750, 0.5
      %v767 = vmul.f32 %v751, 0.5
      %v768 = vmul.f32 %v752, 0.5
      %v769 = vmul.f32 %v753, 0.5
      %v770 = vmul.f32 %v754, 0.5
      %v771 = vmul.f32 %v755, 0.5
      %v772 = vmul.f32 %v756, 0.5
      %v773 = vmul.f32 %v757, 0.5
      %v774 = vrsqrt.pop %v758
      %v775 = vrsqrt.pop %v759
      %v776 = vrsqrt.pop %v760
      %v777 = vrsqrt.pop %v761
      %v778 = vrsqrt.pop %v762
      %v779 = vrsqrt.pop %v763
      %v780 = vrsqrt.pop %v764
      %v781 = vrsqrt.pop %v765
      %v782 = vrsqrt.pop %v766
      %v783 = vrsqrt.pop %v767
      %v784 = vrsqrt.pop %v768
      %v785 = vrsqrt.pop %v769
      %v786 = vrsqrt.pop %v770
      %v787 = vrsqrt.pop %v771
      %v788 = vrsqrt.pop %v772
      %v789 = vrsqrt.pop %v773
      %v790 = vmul.f32 %v616, %v774
      %v791 = vmul.f32 %v619, %v775
      %v792 = vmul.f32 %v624, %v776
      %v793 = vmul.f32 %v627, %v777
      %v794 = vmul.f32 %v632, %v778
      %v795 = vmul.f32 %v635, %v779
      %v796 = vmul.f32 %v640, %v780
      %v797 = vmul.f32 %v643, %v781
      %v798 = vmul.f32 %v648, %v782
      %v799 = vmul.f32 %v651, %v783
      %v800 = vmul.f32 %v656, %v784
      %v801 = vmul.f32 %v659, %v785
      %v802 = vmul.f32 %v664, %v786
      %v803 = vmul.f32 %v667, %v787
      %v804 = vmul.f32 %v672, %v788
      %v805 = vmul.f32 %v675, %v789
      %v806 = vpack.c.bf16 %v791, %v790
      %v807 = vpack.c.bf16 %v793, %v792
      %v808 = vpack.c.bf16 %v795, %v794
      %v809 = vpack.c.bf16 %v797, %v796
      %v810 = vpack.c.bf16 %v799, %v798
      %v811 = vpack.c.bf16 %v801, %v800
      %v812 = vpack.c.bf16 %v803, %v802
      %v813 = vpack.c.bf16 %v805, %v804
      %v822 = vunpack.c.l.b16 %v806
      %v823 = vunpack.c.h.b16 %v806
      %v824 = vunpack.c.l.b16 %v807
      %v825 = vunpack.c.h.b16 %v807
      %v826 = vunpack.c.l.b16 %v808
      %v827 = vunpack.c.h.b16 %v808
      %v828 = vunpack.c.l.b16 %v809
      %v829 = vunpack.c.h.b16 %v809
      %v830 = vunpack.c.l.b16 %v810
      %v831 = vunpack.c.h.b16 %v810
      %v832 = vunpack.c.l.b16 %v811
      %v833 = vunpack.c.h.b16 %v811
      %v834 = vunpack.c.l.b16 %v812
      %v835 = vunpack.c.h.b16 %v812
      %v836 = vunpack.c.l.b16 %v813
      %v837 = vunpack.c.h.b16 %v813
      %v838 = vpack.c.b16 %v822, %v822
      %v839 = vpack.c.b16 %v823, %v823
      %v840 = vpack.c.b16 %v824, %v824
      %v841 = vpack.c.b16 %v825, %v825
      %v842 = vpack.c.b16 %v826, %v826
      %v843 = vpack.c.b16 %v827, %v827
      %v844 = vpack.c.b16 %v828, %v828
      %v845 = vpack.c.b16 %v829, %v829
      %v846 = vpack.c.b16 %v830, %v830
      %v847 = vpack.c.b16 %v831, %v831
      %v848 = vpack.c.b16 %v832, %v832
      %v849 = vpack.c.b16 %v833, %v833
      %v850 = vpack.c.b16 %v834, %v834
      %v851 = vpack.c.b16 %v835, %v835
      %v852 = vpack.c.b16 %v836, %v836
      %v853 = vpack.c.b16 %v837, %v837
      %vm870 = vcmask 257024
      %871 = vst.msk [vmem:[%s226] sm:$0xf] %vm870, %v838
      %872 = vst.msk [vmem:[%s226 + $0x4] sm:$0xf] %vm870, %v839
      %873 = vst.msk [vmem:[%s226 + $0x8] sm:$0xf] %vm870, %v840
      %874 = vst.msk [vmem:[%s226 + $0xc] sm:$0xf] %vm870, %v841
      %875 = vst.msk [vmem:[%s226 + $0x10] sm:$0xf] %vm870, %v842
      %876 = vst.msk [vmem:[%s226 + $0x14] sm:$0xf] %vm870, %v843
      %877 = vst.msk [vmem:[%s226 + $0x18] sm:$0xf] %vm870, %v844
      %878 = vst.msk [vmem:[%s226 + $0x1c] sm:$0xf] %vm870, %v845
      %879 = vst.msk [vmem:[%s226 + $0x20] sm:$0xf] %vm870, %v846
      %880 = vst.msk [vmem:[%s226 + $0x24] sm:$0xf] %vm870, %v847
      %881 = vst.msk [vmem:[%s226 + $0x28] sm:$0xf] %vm870, %v848
      %882 = vst.msk [vmem:[%s226 + $0x2c] sm:$0xf] %vm870, %v849
      %883 = vst.msk [vmem:[%s226 + $0x30] sm:$0xf] %vm870, %v850
      %884 = vst.msk [vmem:[%s226 + $0x34] sm:$0xf] %vm870, %v851
      %885 = vst.msk [vmem:[%s226 + $0x38] sm:$0xf] %vm870, %v852
      %886 = vst.msk [vmem:[%s226 + $0x3c] sm:$0xf] %vm870, %v853
      %s887 = smul.u32 16, %s16
      %p888 = scmp.lt.s32.totalorder %s887, 31
      %s889 = scalar_select %p888, %s887, 31
      %s890 = smul.addr %s889, 4
      %s891 = scalar_lea.vmem %s5, %s890
      // Predicated region
      $region41: #{_lambda_.2} parent=39 // pred_check
        %p892 = pneg %p144
      $region42: #{_lambda_.2} parent=39 // pred_check_branch
        %894 = sbr.rel (%p892) target = $region44
      $region43: #{_lambda_.2} parent=39 // pred_region
        %s895 = smul.u32 16, %s16
      $region44: #{_lambda_.2} parent=39 // pred_fallthru
        _
    $region40: #{_lambda_.2} parent=5 // pred_fallthru
      _
    %p896 = scmp.le.s32.totalorder 2, %s11
    // Predicated region
    $region45: #{_lambda_.2} parent=5 // pred_check
      %p897 = pneg %p896
    $region46: #{_lambda_.2} parent=5 // pred_check_branch
      %899 = sbr.rel (%p897) target = $region48
    $region47: #{_lambda_.2} parent=5 // pred_region
      %s900 = ssub.s32 %s11, 2
      // Predicated region
      $region49: #{_lambda_.2} parent=47 // pred_check
        %p901 = pneg %p150
      $region50: #{_lambda_.2} parent=47 // pred_check_branch
        %903 = sbr.rel (%p901) target = $region52
      $region51: #{_lambda_.2} parent=47 // pred_region
        %s904 = smul.u32 16, %s17
        %p905 = scmp.lt.s32.totalorder %s904, 31
        %s906 = scalar_select %p905, %s904, 31
        %s907 = smul.addr %s906, 4
        %s908 = scalar_lea.vmem %s5, %s907
      $region52: #{_lambda_.2} parent=47 // pred_fallthru
        _
    $region48: #{_lambda_.2} parent=5 // pred_fallthru
      _
  $region6: #{_lambda_.2} parent=0 // loop_footer
    %s15 = sadd.s32 1, %s11
  $region7: #{_lambda_.2} parent=0 // loop_footer_branch
    %10 = sbr.rel target = $region3
  $region8: #{_lambda_.2} parent=0 // loop_exit
    _

// kernel: _lambda_.3
$region0: #{_lambda_.3}
  #allocation0 [shape = 'u32[]', space=smem, size = 0x4, offset = 0x4, fixed_abs, tag = 'smem constant byte address 0x4 - core index']
  #allocation1 [shape = 'u32[144,128]{1,0:T(1,128)}', space=vmem, size = 0x12000, scoped, tag = 'internal scratch']
  #allocation2 [shape = 'f32[1,128]{1,0:T(1,128)}', space=vmem, size = 0x200, scoped, tag = 'scratch operand']
  %s0 = inlined_call_operand.vmem [shape: bf16[256,32], index: 0, kind: input, shape index: {}, may-alias: {0,1,2}]
  %s1 = inlined_call_operand.vmem [shape: bf16[256,32], index: 1, kind: input, shape index: {}, may-alias: {0,1,2}]
  %s2 = inlined_call_operand.vmem [shape: bf16[256,32], index: 2, kind: input, shape index: {}, may-alias: {0,1,2}]
  %s3 = inlined_call_operand.vmem [shape: s32[1,256], index: 3, kind: input, shape index: {}]
  %s4 = inlined_call_operand.vmem [shape: s32[256,1], index: 4, kind: input, shape index: {}]
  %s5 = inlined_call_operand.vmem [shape: f32[1,256], index: 5, kind: output, shape index: {}]
  %s6 = sld [smem:[#allocation0]]
  $region61: #{_lambda_.3} parent=0
    _
  %s8 = ssub.s32 1, %s6
  %s9 = scalar_select 0, %s8, %s6
  loop: start=0, step=1, limit=4
  $region2: #{_lambda_.3} parent=0 // loop_pre_header
    _
  $region3: #{_lambda_.3} parent=0 // loop_header
    %s11 = sphi 0, %s15
    %p12 = scmp.ge.s32.totalorder %s11, 4
    %s18 = sphi 0, %s30
    %s19 = sphi 0, %s26
    %s20 = sphi 0, %s18
    %s21 = sphi 0, %s19
    %s22 = sphi 0, %s20
    %s23 = sphi 0, %s21
    %s33 = sphi 0, %s35
    %s36 = sphi 0, %s33
    %s37 = sphi 0, %s36
    %s53 = sphi 0, %s37
    %s67 = sphi 0, %s69
    %s70 = sphi 0, %s67
    %s71 = sphi 0, %s70
    %s87 = sphi 0, %s71
    %s93 = sphi 0, %s95
    %s96 = sphi 0, %s93
    %s97 = sphi 0, %s96
    %s113 = sphi 0, %s97
    %s119 = sphi 0, %s121
    %s122 = sphi 0, %s119
    %s123 = sphi 0, %s122
    %s139 = sphi 0, %s123
    %s145 = sphi 0, %s147
    %s148 = sphi 0, %s145
    %s149 = sphi 0, %s148
    %s165 = sphi 0, %s149
    %s171 = sphi 0, %s173
    %s174 = sphi 0, %s171
    %s175 = sphi 0, %s174
    %s191 = sphi 0, %s175
  $region4: #{_lambda_.3} parent=0 // loop_header_branch
    %14 = sbr.rel (%p12) target = $region8
  $region5: #{_lambda_.3} parent=0 // loop_body
    %s16 = ssub.s32 %s11, 1
    %s17 = ssub.s32 %s11, 2
    %s24 = sadd.s32 1, %s19
    %p25 = scmp.ge.s32.totalorder %s24, 1
    %s26 = scalar_select %p25, 0, %s24
    %s27 = sadd.s32 1, %s18
    %s28 = scalar_select %p25, %s27, %s18
    %p29 = scmp.ge.s32.totalorder %s28, 2
    %s30 = scalar_select %p29, 0, %s28
    %s31 = ssub.s32 %s18, %s30
    %p32 = scmp.eq.s32.totalorder %s31, 0
    %s34 = sadd.s32 %s33, 1
    %s35 = scalar_select %p32, %s33, %s34
    %p38 = pneg %p32
    %p39 = scmp.eq.s32.totalorder %s11, 1
    %p40 = por %p38, %p39
    %p41 = scmp.ne.s32.totalorder %s33, %s36
    %p42 = scmp.eq.s32.totalorder %s11, 0
    %p43 = por %p41, %p42
    %p44 = scmp.ne.s32.totalorder %s33, %s36
    %p45 = scmp.eq.s32.totalorder %s16, 1
    %p46 = por %p44, %p45
    %p47 = scmp.ne.s32.totalorder %s36, %s37
    %p48 = scmp.eq.s32.totalorder %s16, 0
    %p49 = por %p47, %p48
    %p50 = scmp.ne.s32.totalorder %s36, %s37
    %p51 = scmp.eq.s32.totalorder %s17, 1
    %p52 = por %p50, %p51
    %p54 = scmp.ne.s32.totalorder %s37, %s53
    %p55 = scmp.eq.s32.totalorder %s17, 0
    %p56 = por %p54, %p55
    %p57 = scmp.lt.s32.totalorder %s18, 1
    %s58 = sadd.s32 %s18, 1
    %s59 = ssub.s32 %s18, 1
    %s60 = scalar_select %p57, %s58, %s59
    %p61 = scmp.lt.s32.totalorder %s30, 1
    %s62 = sadd.s32 %s30, 1
    %s63 = ssub.s32 %s30, 1
    %s64 = scalar_select %p61, %s62, %s63
    %s65 = ssub.s32 %s60, %s64
    %p66 = scmp.eq.s32.totalorder %s65, 0
    %s68 = sadd.s32 %s67, 1
    %s69 = scalar_select %p66, %s67, %s68
    %p72 = pneg %p66
    %p73 = scmp.eq.s32.totalorder %s11, 1
    %p74 = por %p72, %p73
    %p75 = scmp.ne.s32.totalorder %s67, %s70
    %p76 = scmp.eq.s32.totalorder %s11, 0
    %p77 = por %p75, %p76
    %p78 = scmp.ne.s32.totalorder %s67, %s70
    %p79 = scmp.eq.s32.totalorder %s16, 1
    %p80 = por %p78, %p79
    %p81 = scmp.ne.s32.totalorder %s70, %s71
    %p82 = scmp.eq.s32.totalorder %s16, 0
    %p83 = por %p81, %p82
    %p84 = scmp.ne.s32.totalorder %s70, %s71
    %p85 = scmp.eq.s32.totalorder %s17, 1
    %p86 = por %p84, %p85
    %p88 = scmp.ne.s32.totalorder %s71, %s87
    %p89 = scmp.eq.s32.totalorder %s17, 0
    %p90 = por %p88, %p89
    %s91 = ssub.s32 %s19, %s26
    %p92 = scmp.eq.s32.totalorder %s91, 0
    %s94 = sadd.s32 %s93, 1
    %s95 = scalar_select %p92, %s93, %s94
    %p98 = pneg %p92
    %p99 = scmp.eq.s32.totalorder %s11, 1
    %p100 = por %p98, %p99
    %p101 = scmp.ne.s32.totalorder %s93, %s96
    %p102 = scmp.eq.s32.totalorder %s11, 0
    %p103 = por %p101, %p102
    %p104 = scmp.ne.s32.totalorder %s93, %s96
    %p105 = scmp.eq.s32.totalorder %s16, 1
    %p106 = por %p104, %p105
    %p107 = scmp.ne.s32.totalorder %s96, %s97
    %p108 = scmp.eq.s32.totalorder %s16, 0
    %p109 = por %p107, %p108
    %p110 = scmp.ne.s32.totalorder %s96, %s97
    %p111 = scmp.eq.s32.totalorder %s17, 1
    %p112 = por %p110, %p111
    %p114 = scmp.ne.s32.totalorder %s97, %s113
    %p115 = scmp.eq.s32.totalorder %s17, 0
    %p116 = por %p114, %p115
    %s117 = ssub.s32 %s18, %s30
    %p118 = scmp.eq.s32.totalorder %s117, 0
    %s120 = sadd.s32 %s119, 1
    %s121 = scalar_select %p118, %s119, %s120
    %p124 = pneg %p118
    %p125 = scmp.eq.s32.totalorder %s11, 1
    %p126 = por %p124, %p125
    %p127 = scmp.ne.s32.totalorder %s119, %s122
    %p128 = scmp.eq.s32.totalorder %s11, 0
    %p129 = por %p127, %p128
    %p130 = scmp.ne.s32.totalorder %s119, %s122
    %p131 = scmp.eq.s32.totalorder %s16, 1
    %p132 = por %p130, %p131
    %p133 = scmp.ne.s32.totalorder %s122, %s123
    %p134 = scmp.eq.s32.totalorder %s16, 0
    %p135 = por %p133, %p134
    %p136 = scmp.ne.s32.totalorder %s122, %s123
    %p137 = scmp.eq.s32.totalorder %s17, 1
    %p138 = por %p136, %p137
    %p140 = scmp.ne.s32.totalorder %s123, %s139
    %p141 = scmp.eq.s32.totalorder %s17, 0
    %p142 = por %p140, %p141
    %s143 = ssub.s32 %s19, %s26
    %p144 = scmp.eq.s32.totalorder %s143, 0
    %s146 = sadd.s32 %s145, 1
    %s147 = scalar_select %p144, %s145, %s146
    %p150 = pneg %p144
    %p151 = scmp.eq.s32.totalorder %s11, 1
    %p152 = por %p150, %p151
    %p153 = scmp.ne.s32.totalorder %s145, %s148
    %p154 = scmp.eq.s32.totalorder %s11, 0
    %p155 = por %p153, %p154
    %p156 = scmp.ne.s32.totalorder %s145, %s148
    %p157 = scmp.eq.s32.totalorder %s16, 1
    %p158 = por %p156, %p157
    %p159 = scmp.ne.s32.totalorder %s148, %s149
    %p160 = scmp.eq.s32.totalorder %s16, 0
    %p161 = por %p159, %p160
    %p162 = scmp.ne.s32.totalorder %s148, %s149
    %p163 = scmp.eq.s32.totalorder %s17, 1
    %p164 = por %p162, %p163
    %p166 = scmp.ne.s32.totalorder %s149, %s165
    %p167 = scmp.eq.s32.totalorder %s17, 0
    %p168 = por %p166, %p167
    %s169 = ssub.s32 %s18, %s30
    %p170 = scmp.eq.s32.totalorder %s169, 0
    %s172 = sadd.s32 %s171, 1
    %s173 = scalar_select %p170, %s171, %s172
    %p176 = pneg %p170
    %p177 = scmp.eq.s32.totalorder %s11, 1
    %p178 = por %p176, %p177
    %p179 = scmp.ne.s32.totalorder %s171, %s174
    %p180 = scmp.eq.s32.totalorder %s11, 0
    %p181 = por %p179, %p180
    %p182 = scmp.ne.s32.totalorder %s171, %s174
    %p183 = scmp.eq.s32.totalorder %s16, 1
    %p184 = por %p182, %p183
    %p185 = scmp.ne.s32.totalorder %s174, %s175
    %p186 = scmp.eq.s32.totalorder %s16, 0
    %p187 = por %p185, %p186
    %p188 = scmp.ne.s32.totalorder %s174, %s175
    %p189 = scmp.eq.s32.totalorder %s17, 1
    %p190 = por %p188, %p189
    %p192 = scmp.ne.s32.totalorder %s175, %s191
    %p193 = scmp.eq.s32.totalorder %s17, 0
    %p194 = por %p192, %p193
    %p195 = scmp.le.s32.totalorder 1, %s11
    %p196 = scmp.lt.s32.totalorder %s11, 3
    %p197 = pnand %p195, %p196
    %p198 = pneg %p197
    // Predicated region
    $region9: #{_lambda_.3} parent=5 // pred_check
      _
    $region10: #{_lambda_.3} parent=5 // pred_check_branch
      %200 = sbr.rel (%p197) target = $region12
    $region11: #{_lambda_.3} parent=5 // pred_region
      %s201 = ssub.s32 %s11, 1
      // Predicated region
      $region13: #{_lambda_.3} parent=11 // pred_check
        %p202 = pneg %p109
      $region14: #{_lambda_.3} parent=11 // pred_check_branch
        %204 = sbr.rel (%p202) target = $region16
      $region15: #{_lambda_.3} parent=11 // pred_region
        %s205 = smul.u32 32, %s21
        %p206 = scmp.lt.s32.totalorder %s205, 31
        %s207 = scalar_select %p206, %s205, 31
        %s208 = smul.addr %s207, 4
        %s209 = scalar_lea.vmem %s2, %s208
        %s210 = smul.u32 32, %s21
      $region16: #{_lambda_.3} parent=11 // pred_fallthru
        _
      // Predicated region
      $region17: #{_lambda_.3} parent=11 // pred_check
        %p211 = pneg %p161
      $region18: #{_lambda_.3} parent=11 // pred_check_branch
        %213 = sbr.rel (%p211) target = $region20
      $region19: #{_lambda_.3} parent=11 // pred_region
        %s214 = smul.u32 32, %s21
        %p215 = scmp.lt.s32.totalorder %s214, 31
        %s216 = scalar_select %p215, %s214, 31
        %s217 = smul.addr %s216, 8
        %s218 = scalar_lea.vmem %s4, %s217
        %s219 = smul.u32 32, %s21
      $region20: #{_lambda_.3} parent=11 // pred_fallthru
        _
    $region12: #{_lambda_.3} parent=5 // pred_fallthru
      _
    %p220 = scmp.lt.s32.totalorder %s11, 2
    // Predicated region
    $region21: #{_lambda_.3} parent=5 // pred_check
      %p221 = pneg %p220
    $region22: #{_lambda_.3} parent=5 // pred_check_branch
      %223 = sbr.rel (%p221) target = $region24
    $region23: #{_lambda_.3} parent=5 // pred_region
      // Predicated region
      $region25: #{_lambda_.3} parent=23 // pred_check
        %p224 = pneg %p43
      $region26: #{_lambda_.3} parent=23 // pred_check_branch
        %226 = sbr.rel (%p224) target = $region28
      $region27: #{_lambda_.3} parent=23 // pred_region
        %s227 = smul.u32 16, %s18
        %p228 = scmp.lt.s32.totalorder %s227, 31
        %s229 = scalar_select %p228, %s227, 31
        %s230 = smul.addr %s229, 4
        %s231 = scalar_lea.vmem %s0, %s230
        %s232 = smul.u32 16, %s18
      $region28: #{_lambda_.3} parent=23 // pred_fallthru
        _
      // Predicated region
      $region29: #{_lambda_.3} parent=23 // pred_check
        %p233 = pneg %p77
      $region30: #{_lambda_.3} parent=23 // pred_check_branch
        %235 = sbr.rel (%p233) target = $region32
      $region31: #{_lambda_.3} parent=23 // pred_region
        %p236 = scmp.lt.s32.totalorder %s18, 1
        %s237 = sadd.s32 %s18, 1
        %s238 = ssub.s32 %s18, 1
        %s239 = scalar_select %p236, %s237, %s238
        %s240 = smul.u32 16, %s239
        %p241 = scmp.lt.s32.totalorder %s240, 31
        %s242 = scalar_select %p241, %s240, 31
        %s243 = smul.addr %s242, 4
        %s244 = scalar_lea.vmem %s1, %s243
        %p245 = scmp.lt.s32.totalorder %s18, 1
        %s246 = sadd.s32 %s18, 1
        %s247 = ssub.s32 %s18, 1
        %s248 = scalar_select %p245, %s246, %s247
        %s249 = smul.u32 16, %s248
      $region32: #{_lambda_.3} parent=23 // pred_fallthru
        _
      // Predicated region
      $region33: #{_lambda_.3} parent=23 // pred_check
        %p250 = pneg %p129
      $region34: #{_lambda_.3} parent=23 // pred_check_branch
        %252 = sbr.rel (%p250) target = $region36
      $region35: #{_lambda_.3} parent=23 // pred_region
        %p253 = scmp.lt.s32.totalorder %s18, 1
        %s254 = scalar_select %p253, %s18, 1
        %s255 = scalar_lea.vmem %s3, %s254
      $region36: #{_lambda_.3} parent=23 // pred_fallthru
        _
    $region24: #{_lambda_.3} parent=5 // pred_fallthru
      _
    %p256 = scmp.le.s32.totalorder 1, %s11
    %p257 = scmp.lt.s32.totalorder %s11, 3
    %p258 = pnand %p256, %p257
    %p259 = pneg %p258
    // Predicated region
    $region37: #{_lambda_.3} parent=5 // pred_check
      _
    $region38: #{_lambda_.3} parent=5 // pred_check_branch
      %261 = sbr.rel (%p258) target = $region40
    $region39: #{_lambda_.3} parent=5 // pred_region
      %s262 = ssub.s32 %s11, 1
      %s263 = smul.u32 16, %s20
      %p264 = scmp.lt.s32.totalorder %s263, 31
      %s265 = scalar_select %p264, %s263, 31
      %s266 = smul.addr %s265, 4
      %s267 = scalar_lea.vmem %s0, %s266
      %p268 = pneg %p49
      %p269 = pneg %p46
      %p270 = scmp.lt.s32.totalorder %s20, 1
      %s271 = sadd.s32 %s20, 1
      %s272 = ssub.s32 %s20, 1
      %s273 = scalar_select %p270, %s271, %s272
      %s274 = smul.u32 16, %s273
      %p275 = scmp.lt.s32.totalorder %s274, 31
      %s276 = scalar_select %p275, %s274, 31
      %s277 = smul.addr %s276, 4
      %s278 = scalar_lea.vmem %s1, %s277
      %p279 = pneg %p83
      %p280 = pneg %p80
      %s281 = smul.u32 32, %s21
      %p282 = scmp.lt.s32.totalorder %s281, 31
      %s283 = scalar_select %p282, %s281, 31
      %s284 = smul.addr %s283, 4
      %s285 = scalar_lea.vmem %s2, %s284
      %p286 = pneg %p109
      %p287 = pneg %p106
      %p288 = scmp.lt.s32.totalorder %s20, 1
      %s289 = scalar_select %p288, %s20, 1
      %s290 = scalar_lea.vmem %s3, %s289
      %p291 = pneg %p135
      %p292 = pneg %p132
      %s293 = smul.u32 32, %s21
      %p294 = scmp.lt.s32.totalorder %s293, 31
      %s295 = scalar_select %p294, %s293, 31
      %s296 = smul.addr %s295, 8
      %s297 = scalar_lea.vmem %s4, %s296
      %p298 = pneg %p161
      %p299 = pneg %p158
      %p300 = pneg %p187
      %p301 = pneg %p184
      %p302 = scmp.lt.s32.totalorder %s20, 1
      %s303 = scalar_select %p302, %s20, 1
      %s304 = scalar_lea.vmem %s5, %s303
      %s305 = smul.u32 16, %s20
      %p306 = scmp.lt.s32.totalorder %s305, 31
      %s307 = scalar_select %p306, %s305, 31
      %s308 = smul.addr %s307, 4
      %s309 = scalar_lea.vmem %s0, %s308
      %s310 = smul.u32 16, %s20
      %p311 = scmp.lt.s32.totalorder %s20, 1
      %s312 = sadd.s32 %s20, 1
      %s313 = ssub.s32 %s20, 1
      %s314 = scalar_select %p311, %s312, %s313
      %s315 = smul.u32 16, %s314
      %p316 = scmp.lt.s32.totalorder %s315, 31
      %s317 = scalar_select %p316, %s315, 31
      %s318 = smul.addr %s317, 4
      %s319 = scalar_lea.vmem %s1, %s318
      %p320 = scmp.lt.s32.totalorder %s20, 1
      %s321 = sadd.s32 %s20, 1
      %s322 = ssub.s32 %s20, 1
      %s323 = scalar_select %p320, %s321, %s322
      %s324 = smul.u32 16, %s323
      %s325 = smul.u32 32, %s21
      %p326 = scmp.lt.s32.totalorder %s325, 31
      %s327 = scalar_select %p326, %s325, 31
      %s328 = smul.addr %s327, 4
      %s329 = scalar_lea.vmem %s2, %s328
      %s330 = smul.u32 32, %s21
      %p331 = scmp.lt.s32.totalorder %s20, 1
      %s332 = scalar_select %p331, %s20, 1
      %s333 = scalar_lea.vmem %s3, %s332
      %s334 = smul.u32 32, %s21
      %p335 = scmp.lt.s32.totalorder %s334, 31
      %s336 = scalar_select %p335, %s334, 31
      %s337 = smul.addr %s336, 8
      %s338 = scalar_lea.vmem %s4, %s337
      %s339 = smul.u32 32, %s21
      %p340 = scmp.lt.s32.totalorder %s20, 1
      %s341 = scalar_select %p340, %s20, 1
      %s342 = scalar_lea.vmem %s5, %s341
      %p344 = scmp.eq.s32.totalorder %s21, 0
      // Predicated region
      $region41: #{_lambda_.3} parent=39 // pred_check
        %p345 = pneg %p344
      $region42: #{_lambda_.3} parent=39 // pred_check_branch
        %347 = sbr.rel (%p345) target = $region44
      $region43: #{_lambda_.3} parent=39 // pred_region
        %348 = vst [vmem:[#allocation2] sm:$0x1] 0.0
      $region44: #{_lambda_.3} parent=39 // pred_fallthru
        _
      %v349 = vld [vmem:[%s329] sm:$0xf]
      %v350 = vld [vmem:[%s329 + $0x4] sm:$0xf]
      %v351 = vld [vmem:[%s329 + $0x8] sm:$0xf]
      %v352 = vld [vmem:[%s329 + $0xc] sm:$0xf]
      %v353 = vld [vmem:[%s329 + $0x10] sm:$0xf]
      %v354 = vld [vmem:[%s329 + $0x14] sm:$0xf]
      %v355 = vld [vmem:[%s329 + $0x18] sm:$0xf]
      %v356 = vld [vmem:[%s329 + $0x1c] sm:$0xf]
      %v357 = vld [vmem:[%s329 + $0x20] sm:$0xf]
      %v358 = vld [vmem:[%s329 + $0x24] sm:$0xf]
      %v359 = vld [vmem:[%s329 + $0x28] sm:$0xf]
      %v360 = vld [vmem:[%s329 + $0x2c] sm:$0xf]
      %v361 = vld [vmem:[%s329 + $0x30] sm:$0xf]
      %v362 = vld [vmem:[%s329 + $0x34] sm:$0xf]
      %v363 = vld [vmem:[%s329 + $0x38] sm:$0xf]
      %v364 = vld [vmem:[%s329 + $0x3c] sm:$0xf]
      %v365 = vld [vmem:[%s329 + $0x40] sm:$0xf]
      %v366 = vld [vmem:[%s329 + $0x44] sm:$0xf]
      %v367 = vld [vmem:[%s329 + $0x48] sm:$0xf]
      %v368 = vld [vmem:[%s329 + $0x4c] sm:$0xf]
      %v369 = vld [vmem:[%s329 + $0x50] sm:$0xf]
      %v370 = vld [vmem:[%s329 + $0x54] sm:$0xf]
      %v371 = vld [vmem:[%s329 + $0x58] sm:$0xf]
      %v372 = vld [vmem:[%s329 + $0x5c] sm:$0xf]
      %v373 = vld [vmem:[%s329 + $0x60] sm:$0xf]
      %v374 = vld [vmem:[%s329 + $0x64] sm:$0xf]
      %v375 = vld [vmem:[%s329 + $0x68] sm:$0xf]
      %v376 = vld [vmem:[%s329 + $0x6c] sm:$0xf]
      %v377 = vld [vmem:[%s329 + $0x70] sm:$0xf]
      %v378 = vld [vmem:[%s329 + $0x74] sm:$0xf]
      %v379 = vld [vmem:[%s329 + $0x78] sm:$0xf]
      %v380 = vld [vmem:[%s329 + $0x7c] sm:$0xf]
      %v381 = vld [vmem:[%s309] sm:$0xf]
      %v382 = vld [vmem:[%s309 + $0x4] sm:$0xf]
      %v383 = vld [vmem:[%s309 + $0x8] sm:$0xf]
      %v384 = vld [vmem:[%s309 + $0xc] sm:$0xf]
      %v385 = vld [vmem:[%s309 + $0x10] sm:$0xf]
      %v386 = vld [vmem:[%s309 + $0x14] sm:$0xf]
      %v387 = vld [vmem:[%s309 + $0x18] sm:$0xf]
      %v388 = vld [vmem:[%s309 + $0x1c] sm:$0xf]
      %v389 = vld [vmem:[%s309 + $0x20] sm:$0xf]
      %v390 = vld [vmem:[%s309 + $0x24] sm:$0xf]
      %v391 = vld [vmem:[%s309 + $0x28] sm:$0xf]
      %v392 = vld [vmem:[%s309 + $0x2c] sm:$0xf]
      %v393 = vld [vmem:[%s309 + $0x30] sm:$0xf]
      %v394 = vld [vmem:[%s309 + $0x34] sm:$0xf]
      %v395 = vld [vmem:[%s309 + $0x38] sm:$0xf]
      %v396 = vld [vmem:[%s309 + $0x3c] sm:$0xf]
      %v429 = vunpack.c.l.b16 %v349
      %v430 = vunpack.c.l.b16 %v350
      %v431 = vunpack.c.l.b16 %v351
      %v432 = vunpack.c.l.b16 %v352
      %v433 = vunpack.c.l.b16 %v353
      %v434 = vunpack.c.l.b16 %v354
      %v435 = vunpack.c.l.b16 %v355
      %v436 = vunpack.c.l.b16 %v356
      %v437 = vunpack.c.l.b16 %v357
      %v438 = vunpack.c.l.b16 %v358
      %v439 = vunpack.c.l.b16 %v359
      %v440 = vunpack.c.l.b16 %v360
      %v441 = vunpack.c.l.b16 %v361
      %v442 = vunpack.c.l.b16 %v362
      %v443 = vunpack.c.l.b16 %v363
      %v444 = vunpack.c.l.b16 %v364
      %v445 = vunpack.c.l.b16 %v365
      %v446 = vunpack.c.l.b16 %v366
      %v447 = vunpack.c.l.b16 %v367
      %v448 = vunpack.c.l.b16 %v368
      %v449 = vunpack.c.l.b16 %v369
      %v450 = vunpack.c.l.b16 %v370
      %v451 = vunpack.c.l.b16 %v371
      %v452 = vunpack.c.l.b16 %v372
      %v453 = vunpack.c.l.b16 %v373
      %v454 = vunpack.c.l.b16 %v374
      %v455 = vunpack.c.l.b16 %v375
      %v456 = vunpack.c.l.b16 %v376
      %v457 = vunpack.c.l.b16 %v377
      %v458 = vunpack.c.l.b16 %v378
      %v459 = vunpack.c.l.b16 %v379
      %v460 = vunpack.c.l.b16 %v380
      %v461 = vpack.c.b16 %v430, %v429
      %v462 = vpack.c.b16 %v432, %v431
      %v463 = vpack.c.b16 %v434, %v433
      %v464 = vpack.c.b16 %v436, %v435
      %v465 = vpack.c.b16 %v438, %v437
      %v466 = vpack.c.b16 %v440, %v439
      %v467 = vpack.c.b16 %v442, %v441
      %v468 = vpack.c.b16 %v444, %v443
      %v469 = vpack.c.b16 %v446, %v445
      %v470 = vpack.c.b16 %v448, %v447
      %v471 = vpack.c.b16 %v450, %v449
      %v472 = vpack.c.b16 %v452, %v451
      %v473 = vpack.c.b16 %v454, %v453
      %v474 = vpack.c.b16 %v456, %v455
      %v475 = vpack.c.b16 %v458, %v457
      %v476 = vpack.c.b16 %v460, %v459
      %v493 = vunpack.c.l.b16 %v381
      %v494 = vunpack.c.l.b16 %v382
      %v495 = vunpack.c.l.b16 %v383
      %v496 = vunpack.c.l.b16 %v384
      %v497 = vunpack.c.l.b16 %v385
      %v498 = vunpack.c.l.b16 %v386
      %v499 = vunpack.c.l.b16 %v387
      %v500 = vunpack.c.l.b16 %v388
      %v501 = vunpack.c.l.b16 %v389
      %v502 = vunpack.c.l.b16 %v390
      %v503 = vunpack.c.l.b16 %v391
      %v504 = vunpack.c.l.b16 %v392
      %v505 = vunpack.c.l.b16 %v393
      %v506 = vunpack.c.l.b16 %v394
      %v507 = vunpack.c.l.b16 %v395
      %v508 = vunpack.c.l.b16 %v396
      %v509 = vpack.c.b16 %v494, %v493
      %v510 = vpack.c.b16 %v496, %v495
      %v511 = vpack.c.b16 %v498, %v497
      %v512 = vpack.c.b16 %v500, %v499
      %v513 = vpack.c.b16 %v502, %v501
      %v514 = vpack.c.b16 %v504, %v503
      %v515 = vpack.c.b16 %v506, %v505
      %v516 = vpack.c.b16 %v508, %v507
      %vm517 = vcmask 261120
      %v519 = vsel %vm517, %v461, 0
      %v522 = vsel %vm517, %v462, 0
      %v525 = vsel %vm517, %v463, 0
      %v528 = vsel %vm517, %v464, 0
      %v531 = vsel %vm517, %v465, 0
      %v534 = vsel %vm517, %v466, 0
      %v537 = vsel %vm517, %v467, 0
      %v540 = vsel %vm517, %v468, 0
      %v543 = vsel %vm517, %v469, 0
      %v546 = vsel %vm517, %v470, 0
      %v549 = vsel %vm517, %v471, 0
      %v552 = vsel %vm517, %v472, 0
      %v555 = vsel %vm517, %v473, 0
      %v558 = vsel %vm517, %v474, 0
      %v561 = vsel %vm517, %v475, 0
      %v564 = vsel %vm517, %v476, 0
      %v567 = vsel %vm517, %v509, 0
      %v570 = vsel %vm517, %v510, 0
      %v573 = vsel %vm517, %v511, 0
      %v576 = vsel %vm517, %v512, 0
      %v579 = vsel %vm517, %v513, 0
      %v582 = vsel %vm517, %v514, 0
      %v585 = vsel %vm517, %v515, 0
      %v588 = vsel %vm517, %v516, 0
      %590 = vmatprep.subr.bf16.mxu0 0
      %591 = vmatpush1.bf16.xpose.msra.mxu0 %v567
      %592 = vmatprep.subr.bf16.mxu0 0
      %593 = vmatpush1.bf16.xpose.msra.mxu0 %v570
      %594 = vmatprep.subr.bf16.mxu0 0
      %595 = vmatpush1.bf16.xpose.msra.mxu0 %v573
      %596 = vmatprep.subr.bf16.mxu0 0
      %597 = vmatpush1.bf16.xpose.msra.mxu0 %v576
      %598 = vmatprep.subr.bf16.mxu0 0
      %599 = vmatpush1.bf16.xpose.msra.mxu0 %v579
      %600 = vmatprep.subr.bf16.mxu0 0
      %601 = vmatpush1.bf16.xpose.msra.mxu0 %v582
      %602 = vmatprep.subr.bf16.mxu0 0
      %603 = vmatpush1.bf16.xpose.msra.mxu0 %v585
      %604 = vmatprep.subr.bf16.mxu0 0
      %605 = vmatpush1.bf16.xpose.msra.mxu0 %v588
      %606 = vmatprep.subr.bf16.mxu0 0
      %607 = vmatpush1.bf16.xpose.msra.mxu0 0
      %608 = vmatprep.subr.bf16.mxu0 0
      %609 = vmatpush1.bf16.xpose.msra.mxu0 0
      %610 = vmatprep.subr.bf16.mxu0 0
      %611 = vmatpush1.bf16.xpose.msra.mxu0 0
      %612 = vmatprep.subr.bf16.mxu0 0
      %613 = vmatpush1.bf16.xpose.msra.mxu0 0
      %614 = vmatprep.subr.bf16.mxu0 0
      %615 = vmatpush1.bf16.xpose.msra.mxu0 0
      %616 = vmatprep.subr.bf16.mxu0 0
      %617 = vmatpush1.bf16.xpose.msra.mxu0 0
      %618 = vmatprep.subr.bf16.mxu0 0
      %619 = vmatpush1.bf16.xpose.msra.mxu0 0
      %620 = vmatprep.subr.bf16.mxu0 0
      %621 = vmatpush1.bf16.xpose.msra.mxu0 0
      %622 = vmatprep.mubr.bf16.mxu0 0
      %623 = vmatmul.mubr.bf16.gmra.mrb[0].mxu0 %v519
      %v624 = vpop.f32.mrb[0].mxu0
      %v625 = vadd.f32 0.0, %v624
      %v626 = vpop.f32.mrb[0].mxu0
      %v627 = vpop.f32.mrb[0].mxu0
      %v628 = vadd.f32 0.0, %v627
      %v629 = vpop.f32.mrb[0].mxu0
      %630 = vmatprep.mubr.bf16.mxu0 0
      %631 = vmatmul.mubr.bf16.gmra.mrb[0].mxu0 %v522
      %v632 = vpop.f32.mrb[0].mxu0
      %v633 = vadd.f32 0.0, %v632
      %v634 = vpop.f32.mrb[0].mxu0
      %v635 = vpop.f32.mrb[0].mxu0
      %v636 = vadd.f32 0.0, %v635
      %v637 = vpop.f32.mrb[0].mxu0
      %638 = vmatprep.mubr.bf16.mxu0 0
      %639 = vmatmul.mubr.bf16.gmra.mrb[0].mxu0 %v525
      %v640 = vpop.f32.mrb[0].mxu0
      %v641 = vadd.f32 0.0, %v640
      %v642 = vpop.f32.mrb[0].mxu0
      %v643 = vpop.f32.mrb[0].mxu0
      %v644 = vadd.f32 0.0, %v643
      %v645 = vpop.f32.mrb[0].mxu0
      %646 = vmatprep.mubr.bf16.mxu0 0
      %647 = vmatmul.mubr.bf16.gmra.mrb[0].mxu0 %v528
      %v648 = vpop.f32.mrb[0].mxu0
      %v649 = vadd.f32 0.0, %v648
      %v650 = vpop.f32.mrb[0].mxu0
      %v651 = vpop.f32.mrb[0].mxu0
      %v652 = vadd.f32 0.0, %v651
      %v653 = vpop.f32.mrb[0].mxu0
      %654 = vmatprep.mubr.bf16.mxu0 0
      %655 = vmatmul.mubr.bf16.gmra.mrb[0].mxu0 %v531
      %v656 = vpop.f32.mrb[0].mxu0
      %v657 = vadd.f32 0.0, %v656
      %v658 = vpop.f32.mrb[0].mxu0
      %v659 = vpop.f32.mrb[0].mxu0
      %v660 = vadd.f32 0.0, %v659
      %v661 = vpop.f32.mrb[0].mxu0
      %662 = vmatprep.mubr.bf16.mxu0 0
      %663 = vmatmul.mubr.bf16.gmra.mrb[0].mxu0 %v534
      %v664 = vpop.f32.mrb[0].mxu0
      %v665 = vadd.f32 0.0, %v664
      %v666 = vpop.f32.mrb[0].mxu0
      %v667 = vpop.f32.mrb[0].mxu0
      %v668 = vadd.f32 0.0, %v667
      %v669 = vpop.f32.mrb[0].mxu0
      %670 = vmatprep.mubr.bf16.mxu0 0
      %671 = vmatmul.mubr.bf16.gmra.mrb[0].mxu0 %v537
      %v672 = vpop.f32.mrb[0].mxu0
      %v673 = vadd.f32 0.0, %v672
      %v674 = vpop.f32.mrb[0].mxu0
      %v675 = vpop.f32.mrb[0].mxu0
      %v676 = vadd.f32 0.0, %v675
      %v677 = vpop.f32.mrb[0].mxu0
      %678 = vmatprep.mubr.bf16.mxu0 0
      %679 = vmatmul.mubr.bf16.gmra.mrb[0].mxu0 %v540
      %v680 = vpop.f32.mrb[0].mxu0
      %v681 = vadd.f32 0.0, %v680
      %v682 = vpop.f32.mrb[0].mxu0
      %v683 = vpop.f32.mrb[0].mxu0
      %v684 = vadd.f32 0.0, %v683
      %v685 = vpop.f32.mrb[0].mxu0
      %686 = vmatprep.mubr.bf16.mxu0 0
      %687 = vmatmul.mubr.bf16.gmra.mrb[0].mxu0 %v543
      %v688 = vpop.f32.mrb[0].mxu0
      %v689 = vadd.f32 0.0, %v688
      %v690 = vpop.f32.mrb[0].mxu0
      %v691 = vpop.f32.mrb[0].mxu0
      %v692 = vadd.f32 0.0, %v691
      %v693 = vpop.f32.mrb[0].mxu0
      %694 = vmatprep.mubr.bf16.mxu0 0
      %695 = vmatmul.mubr.bf16.gmra.mrb[0].mxu0 %v546
      %v696 = vpop.f32.mrb[0].mxu0
      %v697 = vadd.f32 0.0, %v696
      %v698 = vpop.f32.mrb[0].mxu0
      %v699 = vpop.f32.mrb[0].mxu0
      %v700 = vadd.f32 0.0, %v699
      %v701 = vpop.f32.mrb[0].mxu0
      %702 = vmatprep.mubr.bf16.mxu0 0
      %703 = vmatmul.mubr.bf16.gmra.mrb[0].mxu0 %v549
      %v704 = vpop.f32.mrb[0].mxu0
      %v705 = vadd.f32 0.0, %v704
      %v706 = vpop.f32.mrb[0].mxu0
      %v707 = vpop.f32.mrb[0].mxu0
      %v708 = vadd.f32 0.0, %v707
      %v709 = vpop.f32.mrb[0].mxu0
      %710 = vmatprep.mubr.bf16.mxu0 0
      %711 = vmatmul.mubr.bf16.gmra.mrb[0].mxu0 %v552
      %v712 = vpop.f32.mrb[0].mxu0
      %v713 = vadd.f32 0.0, %v712
      %v714 = vpop.f32.mrb[0].mxu0
      %v715 = vpop.f32.mrb[0].mxu0
      %v716 = vadd.f32 0.0, %v715
      %v717 = vpop.f32.mrb[0].mxu0
      %718 = vmatprep.mubr.bf16.mxu0 0
      %719 = vmatmul.mubr.bf16.gmra.mrb[0].mxu0 %v555
      %v720 = vpop.f32.mrb[0].mxu0
      %v721 = vadd.f32 0.0, %v720
      %v722 = vpop.f32.mrb[0].mxu0
      %v723 = vpop.f32.mrb[0].mxu0
      %v724 = vadd.f32 0.0, %v723
      %v725 = vpop.f32.mrb[0].mxu0
      %726 = vmatprep.mubr.bf16.mxu0 0
      %727 = vmatmul.mubr.bf16.gmra.mrb[0].mxu0 %v558
      %v728 = vpop.f32.mrb[0].mxu0
      %v729 = vadd.f32 0.0, %v728
      %v730 = vpop.f32.mrb[0].mxu0
      %v731 = vpop.f32.mrb[0].mxu0
      %v732 = vadd.f32 0.0, %v731
      %v733 = vpop.f32.mrb[0].mxu0
      %734 = vmatprep.mubr.bf16.mxu0 0
      %735 = vmatmul.mubr.bf16.gmra.mrb[0].mxu0 %v561
      %v736 = vpop.f32.mrb[0].mxu0
      %v737 = vadd.f32 0.0, %v736
      %v738 = vpop.f32.mrb[0].mxu0
      %v739 = vpop.f32.mrb[0].mxu0
      %v740 = vadd.f32 0.0, %v739
      %v741 = vpop.f32.mrb[0].mxu0
      %742 = vmatprep.mubr.bf16.mxu0 0
      %743 = vmatmul.mubr.bf16.gmra.mrb[0].mxu0 %v564
      %v744 = vpop.f32.mrb[0].mxu0
      %v745 = vadd.f32 0.0, %v744
      %v746 = vpop.f32.mrb[0].mxu0
      %v747 = vpop.f32.mrb[0].mxu0
      %v748 = vadd.f32 0.0, %v747
      %v749 = vpop.f32.mrb[0].mxu0
      %750 = vdwg.mxu0
      %v751 = vld [vmem:[%s338] sm:$0xff]
      %v752 = vld [vmem:[%s338 + $0x8] sm:$0xff]
      %v753 = vld [vmem:[%s338 + $0x10] sm:$0xff]
      %v754 = vld [vmem:[%s338 + $0x18] sm:$0xff]
      %v755 = vld [vmem:[%s338 + $0x20] sm:$0xff]
      %v756 = vld [vmem:[%s338 + $0x28] sm:$0xff]
      %v757 = vld [vmem:[%s338 + $0x30] sm:$0xff]
      %v758 = vld [vmem:[%s338 + $0x38] sm:$0xff]
      %v759 = vld [vmem:[%s338 + $0x40] sm:$0xff]
      %v760 = vld [vmem:[%s338 + $0x48] sm:$0xff]
      %v761 = vld [vmem:[%s338 + $0x50] sm:$0xff]
      %v762 = vld [vmem:[%s338 + $0x58] sm:$0xff]
      %v763 = vld [vmem:[%s338 + $0x60] sm:$0xff]
      %v764 = vld [vmem:[%s338 + $0x68] sm:$0xff]
      %v765 = vld [vmem:[%s338 + $0x70] sm:$0xff]
      %v766 = vld [vmem:[%s338 + $0x78] sm:$0xff]
      %v767 = vld [vmem:[%s338 + $0x80] sm:$0xff]
      %v768 = vld [vmem:[%s338 + $0x88] sm:$0xff]
      %v769 = vld [vmem:[%s338 + $0x90] sm:$0xff]
      %v770 = vld [vmem:[%s338 + $0x98] sm:$0xff]
      %v771 = vld [vmem:[%s338 + $0xa0] sm:$0xff]
      %v772 = vld [vmem:[%s338 + $0xa8] sm:$0xff]
      %v773 = vld [vmem:[%s338 + $0xb0] sm:$0xff]
      %v774 = vld [vmem:[%s338 + $0xb8] sm:$0xff]
      %v775 = vld [vmem:[%s338 + $0xc0] sm:$0xff]
      %v776 = vld [vmem:[%s338 + $0xc8] sm:$0xff]
      %v777 = vld [vmem:[%s338 + $0xd0] sm:$0xff]
      %v778 = vld [vmem:[%s338 + $0xd8] sm:$0xff]
      %v779 = vld [vmem:[%s338 + $0xe0] sm:$0xff]
      %v780 = vld [vmem:[%s338 + $0xe8] sm:$0xff]
      %v781 = vld [vmem:[%s338 + $0xf0] sm:$0xff]
      %v782 = vld [vmem:[%s338 + $0xf8] sm:$0xff]
      %v783 = vld [vmem:[%s333] sm:$0x1]
      %784 = vset.pattern.permute.xlu0 0
      %785 = vperm.xlu0 %784, %v751
      %v786 = vpop.permute.xlu0 %785
      %787 = vset.pattern.permute.xlu0 0
      %788 = vperm.xlu0 %787, %v752
      %v789 = vpop.permute.xlu0 %788
      %790 = vset.pattern.permute.xlu0 0
      %791 = vperm.xlu0 %790, %v753
      %v792 = vpop.permute.xlu0 %791
      %793 = vset.pattern.permute.xlu0 0
      %794 = vperm.xlu0 %793, %v754
      %v795 = vpop.permute.xlu0 %794
      %796 = vset.pattern.permute.xlu0 0
      %797 = vperm.xlu0 %796, %v755
      %v798 = vpop.permute.xlu0 %797
      %799 = vset.pattern.permute.xlu0 0
      %800 = vperm.xlu0 %799, %v756
      %v801 = vpop.permute.xlu0 %800
      %802 = vset.pattern.permute.xlu0 0
      %803 = vperm.xlu0 %802, %v757
      %v804 = vpop.permute.xlu0 %803
      %805 = vset.pattern.permute.xlu0 0
      %806 = vperm.xlu0 %805, %v758
      %v807 = vpop.permute.xlu0 %806
      %808 = vset.pattern.permute.xlu0 0
      %809 = vperm.xlu0 %808, %v759
      %v810 = vpop.permute.xlu0 %809
      %811 = vset.pattern.permute.xlu0 0
      %812 = vperm.xlu0 %811, %v760
      %v813 = vpop.permute.xlu0 %812
      %814 = vset.pattern.permute.xlu0 0
      %815 = vperm.xlu0 %814, %v761
      %v816 = vpop.permute.xlu0 %815
      %817 = vset.pattern.permute.xlu0 0
      %818 = vperm.xlu0 %817, %v762
      %v819 = vpop.permute.xlu0 %818
      %820 = vset.pattern.permute.xlu0 0
      %821 = vperm.xlu0 %820, %v763
      %v822 = vpop.permute.xlu0 %821
      %823 = vset.pattern.permute.xlu0 0
      %824 = vperm.xlu0 %823, %v764
      %v825 = vpop.permute.xlu0 %824
      %826 = vset.pattern.permute.xlu0 0
      %827 = vperm.xlu0 %826, %v765
      %v828 = vpop.permute.xlu0 %827
      %829 = vset.pattern.permute.xlu0 0
      %830 = vperm.xlu0 %829, %v766
      %v831 = vpop.permute.xlu0 %830
      %832 = vset.pattern.permute.xlu0 0
      %833 = vperm.xlu0 %832, %v767
      %v834 = vpop.permute.xlu0 %833
      %835 = vset.pattern.permute.xlu0 0
      %836 = vperm.xlu0 %835, %v768
      %v837 = vpop.permute.xlu0 %836
      %838 = vset.pattern.permute.xlu0 0
      %839 = vperm.xlu0 %838, %v769
      %v840 = vpop.permute.xlu0 %839
      %841 = vset.pattern.permute.xlu0 0
      %842 = vperm.xlu0 %841, %v770
      %v843 = vpop.permute.xlu0 %842
      %844 = vset.pattern.permute.xlu0 0
      %845 = vperm.xlu0 %844, %v771
      %v846 = vpop.permute.xlu0 %845
      %847 = vset.pattern.permute.xlu0 0
      %848 = vperm.xlu0 %847, %v772
      %v849 = vpop.permute.xlu0 %848
      %850 = vset.pattern.permute.xlu0 0
      %851 = vperm.xlu0 %850, %v773
      %v852 = vpop.permute.xlu0 %851
      %853 = vset.pattern.permute.xlu0 0
      %854 = vperm.xlu0 %853, %v774
      %v855 = vpop.permute.xlu0 %854
      %856 = vset.pattern.permute.xlu0 0
      %857 = vperm.xlu0 %856, %v775
      %v858 = vpop.permute.xlu0 %857
      %859 = vset.pattern.permute.xlu0 0
      %860 = vperm.xlu0 %859, %v776
      %v861 = vpop.permute.xlu0 %860
      %862 = vset.pattern.permute.xlu0 0
      %863 = vperm.xlu0 %862, %v777
      %v864 = vpop.permute.xlu0 %863
      %865 = vset.pattern.permute.xlu0 0
      %866 = vperm.xlu0 %865, %v778
      %v867 = vpop.permute.xlu0 %866
      %868 = vset.pattern.permute.xlu0 0
      %869 = vperm.xlu0 %868, %v779
      %v870 = vpop.permute.xlu0 %869
      %871 = vset.pattern.permute.xlu0 0
      %872 = vperm.xlu0 %871, %v780
      %v873 = vpop.permute.xlu0 %872
      %874 = vset.pattern.permute.xlu0 0
      %875 = vperm.xlu0 %874, %v781
      %v876 = vpop.permute.xlu0 %875
      %877 = vset.pattern.permute.xlu0 0
      %878 = vperm.xlu0 %877, %v782
      %v879 = vpop.permute.xlu0 %878
      %v880 = vlaneseq
      %v881 = vshrl.u32 %v880, 7
      %v882 = vsub.s32 0, %v881
      %v883 = vrot.slane %v783, %v882
      %vm884 = vcmp.eq.s32.totalorder %v786, %v883
      %vm885 = vcmp.eq.s32.totalorder %v789, %v883
      %vm886 = vcmp.eq.s32.totalorder %v792, %v883
      %vm887 = vcmp.eq.s32.totalorder %v795, %v883
      %vm888 = vcmp.eq.s32.totalorder %v798, %v883
      %vm889 = vcmp.eq.s32.totalorder %v801, %v883
      %vm890 = vcmp.eq.s32.totalorder %v804, %v883
      %vm891 = vcmp.eq.s32.totalorder %v807, %v883
      %vm892 = vcmp.eq.s32.totalorder %v810, %v883
      %vm893 = vcmp.eq.s32.totalorder %v813, %v883
      %vm894 = vcmp.eq.s32.totalorder %v816, %v883
      %vm895 = vcmp.eq.s32.totalorder %v819, %v883
      %vm896 = vcmp.eq.s32.totalorder %v822, %v883
      %vm897 = vcmp.eq.s32.totalorder %v825, %v883
      %vm898 = vcmp.eq.s32.totalorder %v828, %v883
      %vm899 = vcmp.eq.s32.totalorder %v831, %v883
      %vm900 = vcmp.eq.s32.totalorder %v834, %v883
      %vm901 = vcmp.eq.s32.totalorder %v837, %v883
      %vm902 = vcmp.eq.s32.totalorder %v840, %v883
      %vm903 = vcmp.eq.s32.totalorder %v843, %v883
      %vm904 = vcmp.eq.s32.totalorder %v846, %v883
      %vm905 = vcmp.eq.s32.totalorder %v849, %v883
      %vm906 = vcmp.eq.s32.totalorder %v852, %v883
      %vm907 = vcmp.eq.s32.totalorder %v855, %v883
      %vm908 = vcmp.eq.s32.totalorder %v858, %v883
      %vm909 = vcmp.eq.s32.totalorder %v861, %v883
      %vm910 = vcmp.eq.s32.totalorder %v864, %v883
      %vm911 = vcmp.eq.s32.totalorder %v867, %v883
      %vm912 = vcmp.eq.s32.totalorder %v870, %v883
      %vm913 = vcmp.eq.s32.totalorder %v873, %v883
      %vm914 = vcmp.eq.s32.totalorder %v876, %v883
      %vm915 = vcmp.eq.s32.totalorder %v879, %v883
      %v916 = vmul.f32 %v625, 1.442695
      %v917 = vpow.pop %v916
      %v918 = vmul.f32 %v628, 1.442695
      %v919 = vpow.pop %v918
      %v920 = vmul.f32 %v633, 1.442695
      %v921 = vpow.pop %v920
      %v922 = vmul.f32 %v636, 1.442695
      %v923 = vpow.pop %v922
      %v924 = vmul.f32 %v641, 1.442695
      %v925 = vpow.pop %v924
      %v926 = vmul.f32 %v644, 1.442695
      %v927 = vpow.pop %v926
      %v928 = vmul.f32 %v649, 1.442695
      %v929 = vpow.pop %v928
      %v930 = vmul.f32 %v652, 1.442695
      %v931 = vpow.pop %v930
      %v932 = vmul.f32 %v657, 1.442695
      %v933 = vpow.pop %v932
      %v934 = vmul.f32 %v660, 1.442695
      %v935 = vpow.pop %v934
      %v936 = vmul.f32 %v665, 1.442695
      %v937 = vpow.pop %v936
      %v938 = vmul.f32 %v668, 1.442695
      %v939 = vpow.pop %v938
      %v940 = vmul.f32 %v673, 1.442695
      %v941 = vpow.pop %v940
      %v942 = vmul.f32 %v676, 1.442695
      %v943 = vpow.pop %v942
      %v944 = vmul.f32 %v681, 1.442695
      %v945 = vpow.pop %v944
      %v946 = vmul.f32 %v684, 1.442695
      %v947 = vpow.pop %v946
      %v948 = vmul.f32 %v689, 1.442695
      %v949 = vpow.pop %v948
      %v950 = vmul.f32 %v692, 1.442695
      %v951 = vpow.pop %v950
      %v952 = vmul.f32 %v697, 1.442695
      %v953 = vpow.pop %v952
      %v954 = vmul.f32 %v700, 1.442695
      %v955 = vpow.pop %v954
      %v956 = vmul.f32 %v705, 1.442695
      %v957 = vpow.pop %v956
      %v958 = vmul.f32 %v708, 1.442695
      %v959 = vpow.pop %v958
      %v960 = vmul.f32 %v713, 1.442695
      %v961 = vpow.pop %v960
      %v962 = vmul.f32 %v716, 1.442695
      %v963 = vpow.pop %v962
      %v964 = vmul.f32 %v721, 1.442695
      %v965 = vpow.pop %v964
      %v966 = vmul.f32 %v724, 1.442695
      %v967 = vpow.pop %v966
      %v968 = vmul.f32 %v729, 1.442695
      %v969 = vpow.pop %v968
      %v970 = vmul.f32 %v732, 1.442695
      %v971 = vpow.pop %v970
      %v972 = vmul.f32 %v737, 1.442695
      %v973 = vpow.pop %v972
      %v974 = vmul.f32 %v740, 1.442695
      %v975 = vpow.pop %v974
      %v976 = vmul.f32 %v745, 1.442695
      %v977 = vpow.pop %v976
      %v978 = vmul.f32 %v748, 1.442695
      %v979 = vpow.pop %v978
      %v980 = vsel %vm884, %v917, 0.0
      %v981 = vsel %vm885, %v919, 0.0
      %v982 = vsel %vm886, %v921, 0.0
      %v983 = vsel %vm887, %v923, 0.0
      %v984 = vsel %vm888, %v925, 0.0
      %v985 = vsel %vm889, %v927, 0.0
      %v986 = vsel %vm890, %v929, 0.0
      %v987 = vsel %vm891, %v931, 0.0
      %v988 = vsel %vm892, %v933, 0.0
      %v989 = vsel %vm893, %v935, 0.0
      %v990 = vsel %vm894, %v937, 0.0
      %v991 = vsel %vm895, %v939, 0.0
      %v992 = vsel %vm896, %v941, 0.0
      %v993 = vsel %vm897, %v943, 0.0
      %v994 = vsel %vm898, %v945, 0.0
      %v995 = vsel %vm899, %v947, 0.0
      %v996 = vsel %vm900, %v949, 0.0
      %v997 = vsel %vm901, %v951, 0.0
      %v998 = vsel %vm902, %v953, 0.0
      %v999 = vsel %vm903, %v955, 0.0
      %v1000 = vsel %vm904, %v957, 0.0
      %v1001 = vsel %vm905, %v959, 0.0
      %v1002 = vsel %vm906, %v961, 0.0
      %v1003 = vsel %vm907, %v963, 0.0
      %v1004 = vsel %vm908, %v965, 0.0
      %v1005 = vsel %vm909, %v967, 0.0
      %v1006 = vsel %vm910, %v969, 0.0
      %v1007 = vsel %vm911, %v971, 0.0
      %v1008 = vsel %vm912, %v973, 0.0
      %v1009 = vsel %vm913, %v975, 0.0
      %v1010 = vsel %vm914, %v977, 0.0
      %v1011 = vsel %vm915, %v979, 0.0
      %v1012 = vld [vmem:[#allocation2] sm:$0x1]
      %v1013 = vadd.f32 %v980, %v981
      %v1014 = vadd.f32 %v1013, %v982
      %v1015 = vadd.f32 %v1014, %v983
      %v1016 = vadd.f32 %v1015, %v984
      %v1017 = vadd.f32 %v1016, %v985
      %v1018 = vadd.f32 %v1017, %v986
      %v1019 = vadd.f32 %v1018, %v987
      %v1020 = vadd.f32 %v1019, %v988
      %v1021 = vadd.f32 %v1020, %v989
      %v1022 = vadd.f32 %v1021, %v990
      %v1023 = vadd.f32 %v1022, %v991
      %v1024 = vadd.f32 %v1023, %v992
      %v1025 = vadd.f32 %v1024, %v993
      %v1026 = vadd.f32 %v1025, %v994
      %v1027 = vadd.f32 %v1026, %v995
      %v1028 = vadd.f32 %v1027, %v996
      %v1029 = vadd.f32 %v1028, %v997
      %v1030 = vadd.f32 %v1029, %v998
      %v1031 = vadd.f32 %v1030, %v999
      %v1032 = vadd.f32 %v1031, %v1000
      %v1033 = vadd.f32 %v1032, %v1001
      %v1034 = vadd.f32 %v1033, %v1002
      %v1035 = vadd.f32 %v1034, %v1003
      %v1036 = vadd.f32 %v1035, %v1004
      %v1037 = vadd.f32 %v1036, %v1005
      %v1038 = vadd.f32 %v1037, %v1006
      %v1039 = vadd.f32 %v1038, %v1007
      %v1040 = vadd.f32 %v1039, %v1008
      %v1041 = vadd.f32 %v1040, %v1009
      %v1042 = vadd.f32 %v1041, %v1010
      %v1043 = vadd.f32 %v1042, %v1011
      %v1044 = vrot.slane %v1043, 4
      %v1045 = vadd.f32 %v1043, %v1044
      %v1046 = vrot.slane %v1045, 2
      %v1047 = vadd.f32 %v1045, %v1046
      %v1048 = vrot.slane %v1047, 1
      %v1049 = vadd.f32 %v1047, %v1048
      %v1050 = vadd.f32 %v1012, %v1049
      %1051 = vst [vmem:[#allocation2] sm:$0x1] %v1050
      // Predicated region
      $region45: #{_lambda_.3} parent=39 // pred_check
        %p1052 = pneg %p344
      $region46: #{_lambda_.3} parent=39 // pred_check_branch
        %1054 = sbr.rel (%p1052) target = $region48
      $region47: #{_lambda_.3} parent=39 // pred_region
        %v1055 = vld [vmem:[%s309] sm:$0xf]
        %v1056 = vld [vmem:[%s309 + $0x4] sm:$0xf]
        %v1057 = vld [vmem:[%s309 + $0x8] sm:$0xf]
        %v1058 = vld [vmem:[%s309 + $0xc] sm:$0xf]
        %v1059 = vld [vmem:[%s309 + $0x10] sm:$0xf]
        %v1060 = vld [vmem:[%s309 + $0x14] sm:$0xf]
        %v1061 = vld [vmem:[%s309 + $0x18] sm:$0xf]
        %v1062 = vld [vmem:[%s309 + $0x1c] sm:$0xf]
        %v1063 = vld [vmem:[%s309 + $0x20] sm:$0xf]
        %v1064 = vld [vmem:[%s309 + $0x24] sm:$0xf]
        %v1065 = vld [vmem:[%s309 + $0x28] sm:$0xf]
        %v1066 = vld [vmem:[%s309 + $0x2c] sm:$0xf]
        %v1067 = vld [vmem:[%s309 + $0x30] sm:$0xf]
        %v1068 = vld [vmem:[%s309 + $0x34] sm:$0xf]
        %v1069 = vld [vmem:[%s309 + $0x38] sm:$0xf]
        %v1070 = vld [vmem:[%s309 + $0x3c] sm:$0xf]
        %v1071 = vunpack.c.l.bf16 %v1055
        %v1072 = vunpack.c.l.bf16 %v1056
        %v1073 = vunpack.c.l.bf16 %v1057
        %v1074 = vunpack.c.l.bf16 %v1058
        %v1075 = vunpack.c.l.bf16 %v1059
        %v1076 = vunpack.c.l.bf16 %v1060
        %v1077 = vunpack.c.l.bf16 %v1061
        %v1078 = vunpack.c.l.bf16 %v1062
        %v1079 = vunpack.c.l.bf16 %v1063
        %v1080 = vunpack.c.l.bf16 %v1064
        %v1081 = vunpack.c.l.bf16 %v1065
        %v1082 = vunpack.c.l.bf16 %v1066
        %v1083 = vunpack.c.l.bf16 %v1067
        %v1084 = vunpack.c.l.bf16 %v1068
        %v1085 = vunpack.c.l.bf16 %v1069
        %v1086 = vunpack.c.l.bf16 %v1070
        %v1087 = vld [vmem:[%s319] sm:$0xf]
        %v1088 = vld [vmem:[%s319 + $0x4] sm:$0xf]
        %v1089 = vld [vmem:[%s319 + $0x8] sm:$0xf]
        %v1090 = vld [vmem:[%s319 + $0xc] sm:$0xf]
        %v1091 = vld [vmem:[%s319 + $0x10] sm:$0xf]
        %v1092 = vld [vmem:[%s319 + $0x14] sm:$0xf]
        %v1093 = vld [vmem:[%s319 + $0x18] sm:$0xf]
        %v1094 = vld [vmem:[%s319 + $0x1c] sm:$0xf]
        %v1095 = vld [vmem:[%s319 + $0x20] sm:$0xf]
        %v1096 = vld [vmem:[%s319 + $0x24] sm:$0xf]
        %v1097 = vld [vmem:[%s319 + $0x28] sm:$0xf]
        %v1098 = vld [vmem:[%s319 + $0x2c] sm:$0xf]
        %v1099 = vld [vmem:[%s319 + $0x30] sm:$0xf]
        %v1100 = vld [vmem:[%s319 + $0x34] sm:$0xf]
        %v1101 = vld [vmem:[%s319 + $0x38] sm:$0xf]
        %v1102 = vld [vmem:[%s319 + $0x3c] sm:$0xf]
        %v1103 = vunpack.c.l.bf16 %v1087
        %v1104 = vunpack.c.l.bf16 %v1088
        %v1105 = vunpack.c.l.bf16 %v1089
        %v1106 = vunpack.c.l.bf16 %v1090
        %v1107 = vunpack.c.l.bf16 %v1091
        %v1108 = vunpack.c.l.bf16 %v1092
        %v1109 = vunpack.c.l.bf16 %v1093
        %v1110 = vunpack.c.l.bf16 %v1094
        %v1111 = vunpack.c.l.bf16 %v1095
        %v1112 = vunpack.c.l.bf16 %v1096
        %v1113 = vunpack.c.l.bf16 %v1097
        %v1114 = vunpack.c.l.bf16 %v1098
        %v1115 = vunpack.c.l.bf16 %v1099
        %v1116 = vunpack.c.l.bf16 %v1100
        %v1117 = vunpack.c.l.bf16 %v1101
        %v1118 = vunpack.c.l.bf16 %v1102
        %v1119 = vmul.f32 %v1071, %v1071
        %v1120 = vmul.f32 %v1072, %v1072
        %v1121 = vmul.f32 %v1073, %v1073
        %v1122 = vmul.f32 %v1074, %v1074
        %v1123 = vmul.f32 %v1075, %v1075
        %v1124 = vmul.f32 %v1076, %v1076
        %v1125 = vmul.f32 %v1077, %v1077
        %v1126 = vmul.f32 %v1078, %v1078
        %v1127 = vmul.f32 %v1079, %v1079
        %v1128 = vmul.f32 %v1080, %v1080
        %v1129 = vmul.f32 %v1081, %v1081
        %v1130 = vmul.f32 %v1082, %v1082
        %v1131 = vmul.f32 %v1083, %v1083
        %v1132 = vmul.f32 %v1084, %v1084
        %v1133 = vmul.f32 %v1085, %v1085
        %v1134 = vmul.f32 %v1086, %v1086
        %v1136 = vsel %vm517, 1.0, 0
        %v1139 = vsel %vm517, %v1119, 0
        %v1142 = vsel %vm517, %v1120, 0
        %v1145 = vsel %vm517, %v1121, 0
        %v1148 = vsel %vm517, %v1122, 0
        %v1151 = vsel %vm517, %v1123, 0
        %v1154 = vsel %vm517, %v1124, 0
        %v1157 = vsel %vm517, %v1125, 0
        %v1160 = vsel %vm517, %v1126, 0
        %v1163 = vsel %vm517, %v1127, 0
        %v1166 = vsel %vm517, %v1128, 0
        %v1169 = vsel %vm517, %v1129, 0
        %v1172 = vsel %vm517, %v1130, 0
        %v1175 = vsel %vm517, %v1131, 0
        %v1178 = vsel %vm517, %v1132, 0
        %v1181 = vsel %vm517, %v1133, 0
        %v1184 = vsel %vm517, %v1134, 0
        %1186 = vmatprep.subr.mxu0 0.0
        %1187 = vmatpush1.xpose.msra.mxu0 %v1139
        %1188 = vmatprep.subr.mxu0 0.0
        %1189 = vmatpush1.xpose.msra.mxu0 %v1142
        %1190 = vmatprep.subr.mxu0 0.0
        %1191 = vmatpush1.xpose.msra.mxu0 %v1145
        %1192 = vmatprep.subr.mxu0 0.0
        %1193 = vmatpush1.xpose.msra.mxu0 %v1148
        %1194 = vmatprep.subr.mxu0 0.0
        %1195 = vmatpush1.xpose.msra.mxu0 %v1151
        %1196 = vmatprep.subr.mxu0 0.0
        %1197 = vmatpush1.xpose.msra.mxu0 %v1154
        %1198 = vmatprep.subr.mxu0 0.0
        %1199 = vmatpush1.xpose.msra.mxu0 %v1157
        %1200 = vmatprep.subr.mxu0 0.0
        %1201 = vmatpush1.xpose.msra.mxu0 %v1160
        %1202 = vmatprep.subr.mxu0 0.0
        %1203 = vmatpush1.xpose.msra.mxu0 %v1163
        %1204 = vmatprep.subr.mxu0 0.0
        %1205 = vmatpush1.xpose.msra.mxu0 %v1166
        %1206 = vmatprep.subr.mxu0 0.0
        %1207 = vmatpush1.xpose.msra.mxu0 %v1169
        %1208 = vmatprep.subr.mxu0 0.0
        %1209 = vmatpush1.xpose.msra.mxu0 %v1172
        %1210 = vmatprep.subr.mxu0 0.0
        %1211 = vmatpush1.xpose.msra.mxu0 %v1175
        %1212 = vmatprep.subr.mxu0 0.0
        %1213 = vmatpush1.xpose.msra.mxu0 %v1178
        %1214 = vmatprep.subr.mxu0 0.0
        %1215 = vmatpush1.xpose.msra.mxu0 %v1181
        %1216 = vmatprep.subr.mxu0 0.0
        %1217 = vmatpush1.xpose.msra.mxu0 %v1184
        %1218 = vmatprep.subr.mxu0 0.0
        %1219 = vmatpush1.xpose.msra.mxu0 0.0
        %1220 = vmatprep.subr.mxu0 0.0
        %1221 = vmatpush1.xpose.msra.mxu0 0.0
        %1222 = vmatprep.subr.mxu0 0.0
        %1223 = vmatpush1.xpose.msra.mxu0 0.0
        %1224 = vmatprep.subr.mxu0 0.0
        %1225 = vmatpush1.xpose.msra.mxu0 0.0
        %1226 = vmatprep.subr.mxu0 0.0
        %1227 = vmatpush1.xpose.msra.mxu0 0.0
        %1228 = vmatprep.subr.mxu0 0.0
        %1229 = vmatpush1.xpose.msra.mxu0 0.0
        %1230 = vmatprep.subr.mxu0 0.0
        %1231 = vmatpush1.xpose.msra.mxu0 0.0
        %1232 = vmatprep.subr.mxu0 0.0
        %1233 = vmatpush1.xpose.msra.mxu0 0.0
        %1234 = vmatprep.subr.mxu0 0.0
        %1235 = vmatpush1.xpose.msra.mxu0 0.0
        %1236 = vmatprep.subr.mxu0 0.0
        %1237 = vmatpush1.xpose.msra.mxu0 0.0
        %1238 = vmatprep.subr.mxu0 0.0
        %1239 = vmatpush1.xpose.msra.mxu0 0.0
        %1240 = vmatprep.subr.mxu0 0.0
        %1241 = vmatpush1.xpose.msra.mxu0 0.0
        %1242 = vmatprep.subr.mxu0 0.0
        %1243 = vmatpush1.xpose.msra.mxu0 0.0
        %1244 = vmatprep.subr.mxu0 0.0
        %1245 = vmatpush1.xpose.msra.mxu0 0.0
        %1246 = vmatprep.subr.mxu0 0.0
        %1247 = vmatpush1.xpose.msra.mxu0 0.0
        %1248 = vmatprep.subr.mxu0 0.0
        %1249 = vmatpush1.xpose.msra.mxu0 0.0
        %1250 = vmatprep.mubr.f32.mxu0 0.0
        %1251 = vmatmul.mubr.f32.gmra.mrb[0].mxu0 %v1136
        %v1252 = vpop.f32.mrb[0].mxu0
        %v1253 = vadd.f32 0.0, %v1252
        %v1254 = vpop.f32.mrb[0].mxu0
        %1255 = vdwg.mxu0
        %v1256 = vmul.f32 %v1071, %v1103
        %v1257 = vmul.f32 %v1072, %v1104
        %v1258 = vmul.f32 %v1073, %v1105
        %v1259 = vmul.f32 %v1074, %v1106
        %v1260 = vmul.f32 %v1075, %v1107
        %v1261 = vmul.f32 %v1076, %v1108
        %v1262 = vmul.f32 %v1077, %v1109
        %v1263 = vmul.f32 %v1078, %v1110
        %v1264 = vmul.f32 %v1079, %v1111
        %v1265 = vmul.f32 %v1080, %v1112
        %v1266 = vmul.f32 %v1081, %v1113
        %v1267 = vmul.f32 %v1082, %v1114
        %v1268 = vmul.f32 %v1083, %v1115
        %v1269 = vmul.f32 %v1084, %v1116
        %v1270 = vmul.f32 %v1085, %v1117
        %v1271 = vmul.f32 %v1086, %v1118
        %v1273 = vsel %vm517, %v1256, 0
        %v1276 = vsel %vm517, %v1257, 0
        %v1279 = vsel %vm517, %v1258, 0
        %v1282 = vsel %vm517, %v1259, 0
        %v1285 = vsel %vm517, %v1260, 0
        %v1288 = vsel %vm517, %v1261, 0
        %v1291 = vsel %vm517, %v1262, 0
        %v1294 = vsel %vm517, %v1263, 0
        %v1297 = vsel %vm517, %v1264, 0
        %v1300 = vsel %vm517, %v1265, 0
        %v1303 = vsel %vm517, %v1266, 0
        %v1306 = vsel %vm517, %v1267, 0
        %v1309 = vsel %vm517, %v1268, 0
        %v1312 = vsel %vm517, %v1269, 0
        %v1315 = vsel %vm517, %v1270, 0
        %v1318 = vsel %vm517, %v1271, 0
        %1320 = vmatprep.subr.mxu0 0.0
        %1321 = vmatpush1.xpose.msra.mxu0 %v1273
        %1322 = vmatprep.subr.mxu0 0.0
        %1323 = vmatpush1.xpose.msra.mxu0 %v1276
        %1324 = vmatprep.subr.mxu0 0.0
        %1325 = vmatpush1.xpose.msra.mxu0 %v1279
        %1326 = vmatprep.subr.mxu0 0.0
        %1327 = vmatpush1.xpose.msra.mxu0 %v1282
        %1328 = vmatprep.subr.mxu0 0.0
        %1329 = vmatpush1.xpose.msra.mxu0 %v1285
        %1330 = vmatprep.subr.mxu0 0.0
        %1331 = vmatpush1.xpose.msra.mxu0 %v1288
        %1332 = vmatprep.subr.mxu0 0.0
        %1333 = vmatpush1.xpose.msra.mxu0 %v1291
        %1334 = vmatprep.subr.mxu0 0.0
        %1335 = vmatpush1.xpose.msra.mxu0 %v1294
        %1336 = vmatprep.subr.mxu0 0.0
        %1337 = vmatpush1.xpose.msra.mxu0 %v1297
        %1338 = vmatprep.subr.mxu0 0.0
        %1339 = vmatpush1.xpose.msra.mxu0 %v1300
        %1340 = vmatprep.subr.mxu0 0.0
        %1341 = vmatpush1.xpose.msra.mxu0 %v1303
        %1342 = vmatprep.subr.mxu0 0.0
        %1343 = vmatpush1.xpose.msra.mxu0 %v1306
        %1344 = vmatprep.subr.mxu0 0.0
        %1345 = vmatpush1.xpose.msra.mxu0 %v1309
        %1346 = vmatprep.subr.mxu0 0.0
        %1347 = vmatpush1.xpose.msra.mxu0 %v1312
        %1348 = vmatprep.subr.mxu0 0.0
        %1349 = vmatpush1.xpose.msra.mxu0 %v1315
        %1350 = vmatprep.subr.mxu0 0.0
        %1351 = vmatpush1.xpose.msra.mxu0 %v1318
        %1352 = vmatprep.subr.mxu0 0.0
        %1353 = vmatpush1.xpose.msra.mxu0 0.0
        %1354 = vmatprep.subr.mxu0 0.0
        %1355 = vmatpush1.xpose.msra.mxu0 0.0
        %1356 = vmatprep.subr.mxu0 0.0
        %1357 = vmatpush1.xpose.msra.mxu0 0.0
        %1358 = vmatprep.subr.mxu0 0.0
        %1359 = vmatpush1.xpose.msra.mxu0 0.0
        %1360 = vmatprep.subr.mxu0 0.0
        %1361 = vmatpush1.xpose.msra.mxu0 0.0
        %1362 = vmatprep.subr.mxu0 0.0
        %1363 = vmatpush1.xpose.msra.mxu0 0.0
        %1364 = vmatprep.subr.mxu0 0.0
        %1365 = vmatpush1.xpose.msra.mxu0 0.0
        %1366 = vmatprep.subr.mxu0 0.0
        %1367 = vmatpush1.xpose.msra.mxu0 0.0
        %1368 = vmatprep.subr.mxu0 0.0
        %1369 = vmatpush1.xpose.msra.mxu0 0.0
        %1370 = vmatprep.subr.mxu0 0.0
        %1371 = vmatpush1.xpose.msra.mxu0 0.0
        %1372 = vmatprep.subr.mxu0 0.0
        %1373 = vmatpush1.xpose.msra.mxu0 0.0
        %1374 = vmatprep.subr.mxu0 0.0
        %1375 = vmatpush1.xpose.msra.mxu0 0.0
        %1376 = vmatprep.subr.mxu0 0.0
        %1377 = vmatpush1.xpose.msra.mxu0 0.0
        %1378 = vmatprep.subr.mxu0 0.0
        %1379 = vmatpush1.xpose.msra.mxu0 0.0
        %1380 = vmatprep.subr.mxu0 0.0
        %1381 = vmatpush1.xpose.msra.mxu0 0.0
        %1382 = vmatprep.subr.mxu0 0.0
        %1383 = vmatpush1.xpose.msra.mxu0 0.0
        %1384 = vmatprep.mubr.f32.mxu0 0.0
        %1385 = vmatmul.mubr.f32.gmra.mrb[0].mxu0 %v1136
        %v1386 = vpop.f32.mrb[0].mxu0
        %v1387 = vadd.f32 0.0, %v1386
        %v1388 = vpop.f32.mrb[0].mxu0
        %1389 = vdwg.mxu0
        %v1390 = vld [vmem:[#allocation2] sm:$0x1]
        %v1391 = vmul.f32 %v1253, 1.442695
        %v1392 = vpow.pop %v1391
        %v1393 = vsub.f32 %v1390, %v1392
        %v1394 = vlog2.pop %v1393
        %v1395 = vmul.f32 %v1394, 0.6931472
        %v1396 = vsub.f32 %v1395, %v1387
        %v1397 = vmul.f32 %v1396, 0.5
        %v1398 = vld [vmem:[%s333] sm:$0x1]
        %vm1399 = vcmp.ge.s32.totalorder %v1398, 0
        %v1400 = vsel %vm1399, %v1397, 0.0
        %1401 = vst [vmem:[%s342] sm:$0x1] %v1400
      $region48: #{_lambda_.3} parent=39 // pred_fallthru
        _
      %p1402 = scmp.lt.s32.totalorder %s20, 1
      %s1403 = scalar_select %p1402, %s20, 1
      %s1404 = scalar_lea.vmem %s5, %s1403
      // Predicated region
      $region49: #{_lambda_.3} parent=39 // pred_check
        %p1405 = pneg %p184
      $region50: #{_lambda_.3} parent=39 // pred_check_branch
        %1407 = sbr.rel (%p1405) target = $region52
      $region51: #{_lambda_.3} parent=39 // pred_region
        _
      $region52: #{_lambda_.3} parent=39 // pred_fallthru
        _
    $region40: #{_lambda_.3} parent=5 // pred_fallthru
      _
    %p1408 = scmp.le.s32.totalorder 2, %s11
    // Predicated region
    $region53: #{_lambda_.3} parent=5 // pred_check
      %p1409 = pneg %p1408
    $region54: #{_lambda_.3} parent=5 // pred_check_branch
      %1411 = sbr.rel (%p1409) target = $region56
    $region55: #{_lambda_.3} parent=5 // pred_region
      %s1412 = ssub.s32 %s11, 2
      // Predicated region
      $region57: #{_lambda_.3} parent=55 // pred_check
        %p1413 = pneg %p190
      $region58: #{_lambda_.3} parent=55 // pred_check_branch
        %1415 = sbr.rel (%p1413) target = $region60
      $region59: #{_lambda_.3} parent=55 // pred_region
        %p1416 = scmp.lt.s32.totalorder %s22, 1
        %s1417 = scalar_select %p1416, %s22, 1
        %s1418 = scalar_lea.vmem %s5, %s1417
      $region60: #{_lambda_.3} parent=55 // pred_fallthru
        _
    $region56: #{_lambda_.3} parent=5 // pred_fallthru
      _
  $region6: #{_lambda_.3} parent=0 // loop_footer
    %s15 = sadd.s32 1, %s11
  $region7: #{_lambda_.3} parent=0 // loop_footer_branch
    %10 = sbr.rel target = $region3
  $region8: #{_lambda_.3} parent=0 // loop_exit
    _

</llo_original>
